<compile_context>
chip_gen: v7x
topology: tpu7x:2x2x1
jax: 0.10.0
libtpu: 0.0.40
codegen_flags: <defaults>
</compile_context>

<pallas_src>
import functools

import jax
import jax.numpy as jnp
from jax.experimental import pallas as pl
from jax.experimental.pallas import tpu as pltpu

MM_DTYPE = jnp.bfloat16  # MXU operand dtype for the throughput path (fp32 accumulate)


def _mm(a, b):
    """MXU matmul: bf16 operands, fp32 accumulation."""
    return jnp.dot(a.astype(MM_DTYPE), b.astype(MM_DTYPE),
                   preferred_element_type=jnp.float32)


# ----------------------------------------------------------------------------
# Fused kernel: pre-MLP -> 2-layer LSTM (last hidden) -> fc1/ReLU -> fc2
# ----------------------------------------------------------------------------
def fused_kernel(x_ref, wff_ref, wrec_ref, v_ref, o_ref, *,
                 T, B, H, C_pad, ff_meta, v_meta):
    # Static-slice accessors into the packed slabs (offsets are Python ints).
    def wff(name, cols=None):
        off, rows, c = ff_meta[name]
        return wff_ref[off:off + rows, 0:(c if cols is None else cols)]

    def vrow(name, cols=None):
        i, c = v_meta[name]
        return v_ref[i:i + 1, 0:(c if cols is None else cols)]

    # ---- pre-MLP over all T*B rows in one pass (rows are time-major: r = t*B + b) ----
    xf = x_ref[...]                                                     # (T*B, D_in) f32
    h = jnp.maximum(_mm(xf, wff("w1")) * vrow("s1") + vrow("b1"), 0.0)
    h = jnp.maximum(_mm(h, wff("w2")) * vrow("s2") + vrow("b2"), 0.0)

    # ---- LSTM layer-1 input projection hoisted out of the recurrence ----
    xproj = _mm(h, wff("wih1")) + vrow("bg1")                           # (T*B, 4H) f32

    # Recurrent weights stay fp32 (numerical fidelity; latency-bound anyway).
    whh1 = wrec_ref[0:H, :]                                             # (H, 4H)
    w2cat = wrec_ref[H:3 * H, :]                                        # (2H, 4H) = [wih2; whh2]
    bg2 = jnp.broadcast_to(vrow("bg2"), (B, 4 * H))                     # hoisted broadcast

    def lstm_gates(g, c):
        # Full-width nonlinearities: 1 sigmoid + 1 tanh over (B, 4H), then static
        # lane slices; gate order is PyTorch's (i, f, g, o).
        sig = jax.nn.sigmoid(g)
        th = jnp.tanh(g)
        c_new = sig[:, H:2 * H] * c + sig[:, 0:H] * th[:, 2 * H:3 * H]
        return sig[:, 3 * H:4 * H] * jnp.tanh(c_new), c_new

    z = jnp.zeros((B, H), jnp.float32)
    h1, c1, h2, c2 = z, z, z, z
    # T is static -> fully unrolled recurrence; B is sublane-aligned so row slices are cheap.
    for t in range(T):
        g1 = xproj[t * B:(t + 1) * B, :] + jnp.dot(
            h1, whh1, preferred_element_type=jnp.float32)
        h1, c1 = lstm_gates(g1, c1)
        # Merged layer-2 matmul: one MXU round trip instead of two per step.
        g2 = jnp.dot(jnp.concatenate([h1, h2], axis=1), w2cat,
                     preferred_element_type=jnp.float32) + bg2
        h2, c2 = lstm_gates(g2, c2)

    # ---- classification head (Dropout == identity in eval); lane-dense padded store ----
    y = jnp.maximum(_mm(h2, wff("wfc1")) + vrow("bfc1"), 0.0)
    o_ref[...] = _mm(y, wff("wfc2", C_pad)) + vrow("bfc2", C_pad)


# ----------------------------------------------------------------------------
# Parameter packing: 16 arrays -> 3 lane-dense slabs (+ static offset metadata)
# ----------------------------------------------------------------------------
def _pad2d(a, rows, cols):
    r, c = a.shape
    return jnp.pad(a, ((0, rows - r), (0, cols - c)))


def pack_params(p):
    # 1) bf16 slab for the "streamed once" feed-forward weights.
    ff_names = ("w1", "w2", "wih1", "wfc1", "wfc2")
    ff_w = pl.cdiv(max(p[n].shape[1] for n in ff_names), 128) * 128
    parts, ff_meta, off = [], {}, 0
    for n in ff_names:
        r, c = p[n].shape
        rp = pl.cdiv(r, 16) * 16                 # keep row offsets bf16-tile aligned
        parts.append(_pad2d(p[n].astype(jnp.bfloat16), rp, ff_w))
        ff_meta[n] = (off, r, c)
        off += rp
    w_ff = jnp.concatenate(parts, axis=0)

    # 2) fp32 slab for the recurrent weights: [whh1 ; wih2 ; whh2] (layer-2 pre-stacked).
    w_rec = jnp.concatenate(
        [p["whh1"], p["wih2"], p["whh2"]], axis=0).astype(jnp.float32)

    # 3) fp32 slab for all scales / biases: one row each -> (8, 128) = one vreg at toy sizes.
    v_names = ("s1", "b1", "s2", "b2", "bg1", "bg2", "bfc1", "bfc2")
    v_w = pl.cdiv(max(p[n].shape[1] for n in v_names), 128) * 128
    v_slab = jnp.concatenate(
        [_pad2d(p[n].astype(jnp.float32), 1, v_w) for n in v_names], axis=0)
    v_meta = {n: (i, p[n].shape[1]) for i, n in enumerate(v_names)}
    return w_ff, w_rec, v_slab, ff_meta, v_meta


# ----------------------------------------------------------------------------
# Wrapper: single pallas_call, 4 operands, whole-array VMEM residency
# ----------------------------------------------------------------------------
_VMEM = pl.BlockSpec(memory_space=pltpu.MemorySpace.VMEM)


def keypoints_lstm_forward(x, p):
    """x: (B, T, K, 3) float32 -> (B, num_classes) float32."""
    B, T, K, F = x.shape
    H = p["whh1"].shape[0]
    num_classes = p["wfc2"].shape[1]
    C_pad = pl.cdiv(num_classes, 128) * 128          # lane-dense output store
    B_pad = max(8, pl.cdiv(B, 8) * 8)                # sublane-aligned batch (B<=8 is free)

    # Time-major flatten of the (tiny) raw input with batch padding: row r = (t, b).
    x_tm = jnp.transpose(x.reshape(B, T, K * F), (1, 0, 2))      # (T, B, D_in)
    x_tm = jnp.pad(x_tm, ((0, 0), (0, B_pad - B), (0, 0)))
    x_tm = x_tm.reshape(T * B_pad, K * F)

    w_ff, w_rec, v_slab, ff_meta, v_meta = pack_params(p)

    kernel = functools.partial(fused_kernel, T=T, B=B_pad, H=H, C_pad=C_pad,
                               ff_meta=ff_meta, v_meta=v_meta)
    out = pl.pallas_call(
        kernel,
        out_shape=jax.ShapeDtypeStruct((B_pad, C_pad), jnp.float32),
        in_specs=[_VMEM] * 4,
        out_specs=_VMEM,
    )(x_tm, w_ff, w_rec, v_slab)
    return out[:B, :num_classes]


# ----------------------------------------------------------------------------
# Pure-JAX reference (same folded params, same precision policy as the kernel)
# ----------------------------------------------------------------------------
def reference_forward(x, p):
    B, T, K, F = x.shape
    H = p["whh1"].shape[0]

    xf = x.reshape(B * T, K * F)
    h = jnp.maximum(_mm(xf, p["w1"]) * p["s1"] + p["b1"], 0.0)
    h = jnp.maximum(_mm(h, p["w2"]) * p["s2"] + p["b2"], 0.0)
    seq = h.reshape(B, T, -1)

    whh1 = p["whh1"].astype(jnp.float32)
    w2cat = jnp.concatenate([p["wih2"], p["whh2"]], axis=0).astype(jnp.float32)

    def cell_gates(g, c):
        i = jax.nn.sigmoid(g[:, :H])
        f = jax.nn.sigmoid(g[:, H:2 * H])
        gg = jnp.tanh(g[:, 2 * H:3 * H])
        o = jax.nn.sigmoid(g[:, 3 * H:])
        c_new = f * c + i * gg
        return o * jnp.tanh(c_new), c_new

    h1 = c1 = h2 = c2 = jnp.zeros((B, H), jnp.float32)
    for t in range(T):
        g1 = (_mm(seq[:, t, :], p["wih1"]) + p["bg1"]
              + jnp.dot(h1, whh1, preferred_element_type=jnp.float32))
        h1, c1 = cell_gates(g1, c1)
        g2 = jnp.dot(jnp.concatenate([h1, h2], axis=1), w2cat,
                     preferred_element_type=jnp.float32) + p["bg2"]
        h2, c2 = cell_gates(g2, c2)
    y = jnp.maximum(_mm(h2, p["wfc1"]) + p["bfc1"], 0.0)
    return _mm(y, p["wfc2"]) + p["bfc2"]


# ----------------------------------------------------------------------------
# Deterministic parameter construction (synthetic; no checkpoint loading)
# ----------------------------------------------------------------------------
def make_params(key, input_size, hidden, mlp_hidden, num_classes):
    ks = jax.random.split(key, 24)
    f32 = jnp.float32
    H1, H2 = mlp_hidden, mlp_hidden // 2

    def nrm(k, shape, s=0.1):
        return (s * jax.random.normal(k, shape)).astype(f32)

    def bn_fold(kg, kb, km, kv, lin_bias, dim):
        gamma = 1.0 + nrm(kg, (dim,), 0.1)
        beta = nrm(kb, (dim,), 0.05)
        mean = nrm(km, (dim,), 0.05)
        var = 1.0 + jnp.abs(nrm(kv, (dim,), 0.1))
        scale = gamma / jnp.sqrt(var + 1e-5)
        shift = beta - mean * scale
        return scale.reshape(1, -1), (lin_bias * scale + shift).reshape(1, -1)

    # pre_mlp
    w1 = nrm(ks[0], (input_size, H1))
    lb1 = nrm(ks[1], (H1,), 0.05)
    s1, b1 = bn_fold(ks[2], ks[3], ks[4], ks[5], lb1, H1)
    w2 = nrm(ks[6], (H1, H2))
    lb2 = nrm(ks[7], (H2,), 0.05)
    s2, b2 = bn_fold(ks[8], ks[9], ks[10], ks[11], lb2, H2)

    # LSTM (weights stored transposed: (in, 4H)); gate order i,f,g,o; b_ih+b_hh pre-summed
    wih1 = nrm(ks[12], (H2, 4 * hidden))
    whh1 = nrm(ks[13], (hidden, 4 * hidden))
    bg1 = (nrm(ks[14], (4 * hidden,), 0.05)
           + nrm(ks[15], (4 * hidden,), 0.05)).reshape(1, -1)
    wih2 = nrm(ks[16], (hidden, 4 * hidden))
    whh2 = nrm(ks[17], (hidden, 4 * hidden))
    bg2 = (nrm(ks[18], (4 * hidden,), 0.05)
           + nrm(ks[19], (4 * hidden,), 0.05)).reshape(1, -1)

    # head
    wfc1 = nrm(ks[20], (hidden, hidden))
    bfc1 = nrm(ks[21], (hidden,), 0.05).reshape(1, -1)
    wfc2 = nrm(ks[22], (hidden, num_classes))
    bfc2 = nrm(ks[23], (num_classes,), 0.05).reshape(1, -1)

    return dict(w1=w1, s1=s1, b1=b1, w2=w2, s2=s2, b2=b2,
                wih1=wih1, whh1=whh1, bg1=bg1,
                wih2=wih2, whh2=whh2, bg2=bg2,
                wfc1=wfc1, bfc1=bfc1, wfc2=wfc2, bfc2=bfc2)


if __name__ == "__main__":
    # Small shapes consistent with the module's forward contract
    B, T, K, F = 2, 8, 16, 3          # input (B, seq, keypoints, 3)
    input_size = K * F                # 48
    hidden = 32
    mlp_hidden = 64
    num_classes = 16

    root = jax.random.PRNGKey(0)
    kx, kp = jax.random.split(root)
    x = jax.random.normal(kx, (B, T, K, F), dtype=jnp.float32)
    params = make_params(kp, input_size, hidden, mlp_hidden, num_classes)

    out = keypoints_lstm_forward(x, params)
    out = jax.block_until_ready(out)
    assert out.shape == (B, num_classes), out.shape

    ref = reference_forward(x, params)
    assert jnp.allclose(out, ref, rtol=2e-2, atol=2e-3), (
        "mismatch vs reference: max abs diff "
        f"{float(jnp.max(jnp.abs(out - ref)))}")

    print("KERNEL_OK")
</pallas_src>

<mosaic_0001>
module attributes {stable_mosaic.version = 11 : i64} {
  func.func @fused_kernel(%arg0: memref<64x48xf32, #tpu.memory_space<vmem>>, %arg1: memref<208x128xbf16, #tpu.memory_space<vmem>>, %arg2: memref<96x128xf32, #tpu.memory_space<vmem>>, %arg3: memref<8x128xf32, #tpu.memory_space<vmem>>, %arg4: memref<8x128xf32, #tpu.memory_space<vmem>>) attributes {dimension_semantics = [], scalar_prefetch = 0 : i64, scratch_operands = 0 : i64, tpu.core_type = #tpu.core_type<tc>} {
    %c0 = arith.constant 0 : index
    %c0_0 = arith.constant 0 : index
    %0 = vector.load %arg0[%c0, %c0_0] : memref<64x48xf32, #tpu.memory_space<vmem>>, vector<64x48xf32>
    %c0_1 = arith.constant 0 : index
    %c0_2 = arith.constant 0 : index
    %1 = vector.load %arg1[%c0_1, %c0_2] : memref<208x128xbf16, #tpu.memory_space<vmem>>, vector<48x64xbf16>
    %2 = arith.truncf %0 : vector<64x48xf32> to vector<64x48xbf16>
    %cst = arith.constant dense<0.000000e+00> : vector<64x64xf32>
    %3 = tpu.matmul %2, %1, %cst {dimension_numbers = #tpu.dot_dimension_numbers<[1], [0], [0], [1], [0, 0, 1, 1], [], []>} : vector<64x48xbf16>, vector<48x64xbf16>, vector<64x64xf32> -> vector<64x64xf32>
    %c0_3 = arith.constant 0 : index
    %c0_4 = arith.constant 0 : index
    %4 = vector.load %arg3[%c0_3, %c0_4] : memref<8x128xf32, #tpu.memory_space<vmem>>, vector<1x64xf32>
    %5 = vector.broadcast %4 : vector<1x64xf32> to vector<64x64xf32>
    %6 = arith.mulf %3, %5 : vector<64x64xf32>
    %c1 = arith.constant 1 : index
    %c0_5 = arith.constant 0 : index
    %7 = vector.load %arg3[%c1, %c0_5] : memref<8x128xf32, #tpu.memory_space<vmem>>, vector<1x64xf32>
    %8 = vector.broadcast %7 : vector<1x64xf32> to vector<64x64xf32>
    %9 = arith.addf %6, %8 : vector<64x64xf32>
    %cst_6 = arith.constant 0.000000e+00 : f32
    %10 = vector.broadcast %cst_6 : f32 to vector<64x64xf32>
    %11 = arith.maximumf %9, %10 : vector<64x64xf32>
    %c48 = arith.constant 48 : index
    %c0_7 = arith.constant 0 : index
    %12 = vector.load %arg1[%c48, %c0_7] : memref<208x128xbf16, #tpu.memory_space<vmem>>, vector<64x32xbf16>
    %13 = arith.truncf %11 : vector<64x64xf32> to vector<64x64xbf16>
    %cst_8 = arith.constant dense<0.000000e+00> : vector<64x32xf32>
    %14 = tpu.matmul %13, %12, %cst_8 {dimension_numbers = #tpu.dot_dimension_numbers<[1], [0], [0], [1], [0, 0, 1, 1], [], []>} : vector<64x64xbf16>, vector<64x32xbf16>, vector<64x32xf32> -> vector<64x32xf32>
    %c2 = arith.constant 2 : index
    %c0_9 = arith.constant 0 : index
    %15 = vector.load %arg3[%c2, %c0_9] : memref<8x128xf32, #tpu.memory_space<vmem>>, vector<1x32xf32>
    %16 = vector.broadcast %15 : vector<1x32xf32> to vector<64x32xf32>
    %17 = arith.mulf %14, %16 : vector<64x32xf32>
    %c3 = arith.constant 3 : index
    %c0_10 = arith.constant 0 : index
    %18 = vector.load %arg3[%c3, %c0_10] : memref<8x128xf32, #tpu.memory_space<vmem>>, vector<1x32xf32>
    %19 = vector.broadcast %18 : vector<1x32xf32> to vector<64x32xf32>
    %20 = arith.addf %17, %19 : vector<64x32xf32>
    %cst_11 = arith.constant 0.000000e+00 : f32
    %21 = vector.broadcast %cst_11 : f32 to vector<64x32xf32>
    %22 = arith.maximumf %20, %21 : vector<64x32xf32>
    %c112 = arith.constant 112 : index
    %c0_12 = arith.constant 0 : index
    %23 = vector.load %arg1[%c112, %c0_12] : memref<208x128xbf16, #tpu.memory_space<vmem>>, vector<32x128xbf16>
    %24 = arith.truncf %22 : vector<64x32xf32> to vector<64x32xbf16>
    %cst_13 = arith.constant dense<0.000000e+00> : vector<64x128xf32>
    %25 = tpu.matmul %24, %23, %cst_13 {dimension_numbers = #tpu.dot_dimension_numbers<[1], [0], [0], [1], [0, 0, 1, 1], [], []>} : vector<64x32xbf16>, vector<32x128xbf16>, vector<64x128xf32> -> vector<64x128xf32>
    %c4 = arith.constant 4 : index
    %c0_14 = arith.constant 0 : index
    %26 = vector.load %arg3[%c4, %c0_14] : memref<8x128xf32, #tpu.memory_space<vmem>>, vector<1x128xf32>
    %27 = vector.broadcast %26 : vector<1x128xf32> to vector<64x128xf32>
    %28 = arith.addf %25, %27 : vector<64x128xf32>
    %c0_15 = arith.constant 0 : index
    %c0_16 = arith.constant 0 : index
    %29 = vector.load %arg2[%c0_15, %c0_16] : memref<96x128xf32, #tpu.memory_space<vmem>>, vector<32x128xf32>
    %c32 = arith.constant 32 : index
    %c0_17 = arith.constant 0 : index
    %30 = vector.load %arg2[%c32, %c0_17] : memref<96x128xf32, #tpu.memory_space<vmem>>, vector<64x128xf32>
    %c5 = arith.constant 5 : index
    %c0_18 = arith.constant 0 : index
    %31 = vector.load %arg3[%c5, %c0_18] : memref<8x128xf32, #tpu.memory_space<vmem>>, vector<1x128xf32>
    %32 = vector.shape_cast %31 : vector<1x128xf32> to vector<1x128xf32>
    %33 = vector.broadcast %32 : vector<1x128xf32> to vector<8x128xf32>
    %cst_19 = arith.constant 0.000000e+00 : f32
    %34 = vector.broadcast %cst_19 : f32 to vector<8x32xf32>
    %35 = vector.extract_strided_slice %28 {offsets = [0, 0], sizes = [8, 128], strides = [1, 1]} : vector<64x128xf32> to vector<8x128xf32>
    %cst_20 = arith.constant dense<0.000000e+00> : vector<8x128xf32>
    %36 = tpu.matmul %34, %29, %cst_20 {dimension_numbers = #tpu.dot_dimension_numbers<[1], [0], [0], [1], [0, 0, 1, 1], [], []>} : vector<8x32xf32>, vector<32x128xf32>, vector<8x128xf32> -> vector<8x128xf32>
    %37 = arith.addf %35, %36 : vector<8x128xf32>
    %38 = arith.negf %37 : vector<8x128xf32>
    %39 = math.exp %38 : vector<8x128xf32>
    %cst_21 = arith.constant 1.000000e+00 : f32
    %40 = vector.broadcast %cst_21 : f32 to vector<8x128xf32>
    %41 = arith.addf %40, %39 : vector<8x128xf32>
    %42 = arith.divf %40, %41 : vector<8x128xf32>
    %43 = math.tanh %37 : vector<8x128xf32>
    %44 = vector.extract_strided_slice %42 {offsets = [0, 32], sizes = [8, 32], strides = [1, 1]} : vector<8x128xf32> to vector<8x32xf32>
    %45 = arith.mulf %44, %34 : vector<8x32xf32>
    %46 = vector.extract_strided_slice %42 {offsets = [0, 0], sizes = [8, 32], strides = [1, 1]} : vector<8x128xf32> to vector<8x32xf32>
    %47 = vector.extract_strided_slice %43 {offsets = [0, 64], sizes = [8, 32], strides = [1, 1]} : vector<8x128xf32> to vector<8x32xf32>
    %48 = arith.mulf %46, %47 : vector<8x32xf32>
    %49 = arith.addf %45, %48 : vector<8x32xf32>
    %50 = vector.extract_strided_slice %42 {offsets = [0, 96], sizes = [8, 32], strides = [1, 1]} : vector<8x128xf32> to vector<8x32xf32>
    %51 = math.tanh %49 : vector<8x32xf32>
    %52 = arith.mulf %50, %51 : vector<8x32xf32>
    %53 = tpu.concatenate %52, %34 in 1 : vector<8x32xf32>, vector<8x32xf32> -> vector<8x64xf32>
    %cst_22 = arith.constant dense<0.000000e+00> : vector<8x128xf32>
    %54 = tpu.matmul %53, %30, %cst_22 {dimension_numbers = #tpu.dot_dimension_numbers<[1], [0], [0], [1], [0, 0, 1, 1], [], []>} : vector<8x64xf32>, vector<64x128xf32>, vector<8x128xf32> -> vector<8x128xf32>
    %55 = arith.addf %54, %33 : vector<8x128xf32>
    %56 = arith.negf %55 : vector<8x128xf32>
    %57 = math.exp %56 : vector<8x128xf32>
    %cst_23 = arith.constant 1.000000e+00 : f32
    %58 = vector.broadcast %cst_23 : f32 to vector<8x128xf32>
    %59 = arith.addf %58, %57 : vector<8x128xf32>
    %60 = arith.divf %58, %59 : vector<8x128xf32>
    %61 = math.tanh %55 : vector<8x128xf32>
    %62 = vector.extract_strided_slice %60 {offsets = [0, 32], sizes = [8, 32], strides = [1, 1]} : vector<8x128xf32> to vector<8x32xf32>
    %63 = arith.mulf %62, %34 : vector<8x32xf32>
    %64 = vector.extract_strided_slice %60 {offsets = [0, 0], sizes = [8, 32], strides = [1, 1]} : vector<8x128xf32> to vector<8x32xf32>
    %65 = vector.extract_strided_slice %61 {offsets = [0, 64], sizes = [8, 32], strides = [1, 1]} : vector<8x128xf32> to vector<8x32xf32>
    %66 = arith.mulf %64, %65 : vector<8x32xf32>
    %67 = arith.addf %63, %66 : vector<8x32xf32>
    %68 = vector.extract_strided_slice %60 {offsets = [0, 96], sizes = [8, 32], strides = [1, 1]} : vector<8x128xf32> to vector<8x32xf32>
    %69 = math.tanh %67 : vector<8x32xf32>
    %70 = arith.mulf %68, %69 : vector<8x32xf32>
    %71 = vector.extract_strided_slice %28 {offsets = [8, 0], sizes = [8, 128], strides = [1, 1]} : vector<64x128xf32> to vector<8x128xf32>
    %cst_24 = arith.constant dense<0.000000e+00> : vector<8x128xf32>
    %72 = tpu.matmul %52, %29, %cst_24 {dimension_numbers = #tpu.dot_dimension_numbers<[1], [0], [0], [1], [0, 0, 1, 1], [], []>} : vector<8x32xf32>, vector<32x128xf32>, vector<8x128xf32> -> vector<8x128xf32>
    %73 = arith.addf %71, %72 : vector<8x128xf32>
    %74 = arith.negf %73 : vector<8x128xf32>
    %75 = math.exp %74 : vector<8x128xf32>
    %cst_25 = arith.constant 1.000000e+00 : f32
    %76 = vector.broadcast %cst_25 : f32 to vector<8x128xf32>
    %77 = arith.addf %76, %75 : vector<8x128xf32>
    %78 = arith.divf %76, %77 : vector<8x128xf32>
    %79 = math.tanh %73 : vector<8x128xf32>
    %80 = vector.extract_strided_slice %78 {offsets = [0, 32], sizes = [8, 32], strides = [1, 1]} : vector<8x128xf32> to vector<8x32xf32>
    %81 = arith.mulf %80, %49 : vector<8x32xf32>
    %82 = vector.extract_strided_slice %78 {offsets = [0, 0], sizes = [8, 32], strides = [1, 1]} : vector<8x128xf32> to vector<8x32xf32>
    %83 = vector.extract_strided_slice %79 {offsets = [0, 64], sizes = [8, 32], strides = [1, 1]} : vector<8x128xf32> to vector<8x32xf32>
    %84 = arith.mulf %82, %83 : vector<8x32xf32>
    %85 = arith.addf %81, %84 : vector<8x32xf32>
    %86 = vector.extract_strided_slice %78 {offsets = [0, 96], sizes = [8, 32], strides = [1, 1]} : vector<8x128xf32> to vector<8x32xf32>
    %87 = math.tanh %85 : vector<8x32xf32>
    %88 = arith.mulf %86, %87 : vector<8x32xf32>
    %89 = tpu.concatenate %88, %70 in 1 : vector<8x32xf32>, vector<8x32xf32> -> vector<8x64xf32>
    %cst_26 = arith.constant dense<0.000000e+00> : vector<8x128xf32>
    %90 = tpu.matmul %89, %30, %cst_26 {dimension_numbers = #tpu.dot_dimension_numbers<[1], [0], [0], [1], [0, 0, 1, 1], [], []>} : vector<8x64xf32>, vector<64x128xf32>, vector<8x128xf32> -> vector<8x128xf32>
    %91 = arith.addf %90, %33 : vector<8x128xf32>
    %92 = arith.negf %91 : vector<8x128xf32>
    %93 = math.exp %92 : vector<8x128xf32>
    %cst_27 = arith.constant 1.000000e+00 : f32
    %94 = vector.broadcast %cst_27 : f32 to vector<8x128xf32>
    %95 = arith.addf %94, %93 : vector<8x128xf32>
    %96 = arith.divf %94, %95 : vector<8x128xf32>
    %97 = math.tanh %91 : vector<8x128xf32>
    %98 = vector.extract_strided_slice %96 {offsets = [0, 32], sizes = [8, 32], strides = [1, 1]} : vector<8x128xf32> to vector<8x32xf32>
    %99 = arith.mulf %98, %67 : vector<8x32xf32>
    %100 = vector.extract_strided_slice %96 {offsets = [0, 0], sizes = [8, 32], strides = [1, 1]} : vector<8x128xf32> to vector<8x32xf32>
    %101 = vector.extract_strided_slice %97 {offsets = [0, 64], sizes = [8, 32], strides = [1, 1]} : vector<8x128xf32> to vector<8x32xf32>
    %102 = arith.mulf %100, %101 : vector<8x32xf32>
    %103 = arith.addf %99, %102 : vector<8x32xf32>
    %104 = vector.extract_strided_slice %96 {offsets = [0, 96], sizes = [8, 32], strides = [1, 1]} : vector<8x128xf32> to vector<8x32xf32>
    %105 = math.tanh %103 : vector<8x32xf32>
    %106 = arith.mulf %104, %105 : vector<8x32xf32>
    %107 = vector.extract_strided_slice %28 {offsets = [16, 0], sizes = [8, 128], strides = [1, 1]} : vector<64x128xf32> to vector<8x128xf32>
    %cst_28 = arith.constant dense<0.000000e+00> : vector<8x128xf32>
    %108 = tpu.matmul %88, %29, %cst_28 {dimension_numbers = #tpu.dot_dimension_numbers<[1], [0], [0], [1], [0, 0, 1, 1], [], []>} : vector<8x32xf32>, vector<32x128xf32>, vector<8x128xf32> -> vector<8x128xf32>
    %109 = arith.addf %107, %108 : vector<8x128xf32>
    %110 = arith.negf %109 : vector<8x128xf32>
    %111 = math.exp %110 : vector<8x128xf32>
    %cst_29 = arith.constant 1.000000e+00 : f32
    %112 = vector.broadcast %cst_29 : f32 to vector<8x128xf32>
    %113 = arith.addf %112, %111 : vector<8x128xf32>
    %114 = arith.divf %112, %113 : vector<8x128xf32>
    %115 = math.tanh %109 : vector<8x128xf32>
    %116 = vector.extract_strided_slice %114 {offsets = [0, 32], sizes = [8, 32], strides = [1, 1]} : vector<8x128xf32> to vector<8x32xf32>
    %117 = arith.mulf %116, %85 : vector<8x32xf32>
    %118 = vector.extract_strided_slice %114 {offsets = [0, 0], sizes = [8, 32], strides = [1, 1]} : vector<8x128xf32> to vector<8x32xf32>
    %119 = vector.extract_strided_slice %115 {offsets = [0, 64], sizes = [8, 32], strides = [1, 1]} : vector<8x128xf32> to vector<8x32xf32>
    %120 = arith.mulf %118, %119 : vector<8x32xf32>
    %121 = arith.addf %117, %120 : vector<8x32xf32>
    %122 = vector.extract_strided_slice %114 {offsets = [0, 96], sizes = [8, 32], strides = [1, 1]} : vector<8x128xf32> to vector<8x32xf32>
    %123 = math.tanh %121 : vector<8x32xf32>
    %124 = arith.mulf %122, %123 : vector<8x32xf32>
    %125 = tpu.concatenate %124, %106 in 1 : vector<8x32xf32>, vector<8x32xf32> -> vector<8x64xf32>
    %cst_30 = arith.constant dense<0.000000e+00> : vector<8x128xf32>
    %126 = tpu.matmul %125, %30, %cst_30 {dimension_numbers = #tpu.dot_dimension_numbers<[1], [0], [0], [1], [0, 0, 1, 1], [], []>} : vector<8x64xf32>, vector<64x128xf32>, vector<8x128xf32> -> vector<8x128xf32>
    %127 = arith.addf %126, %33 : vector<8x128xf32>
    %128 = arith.negf %127 : vector<8x128xf32>
    %129 = math.exp %128 : vector<8x128xf32>
    %cst_31 = arith.constant 1.000000e+00 : f32
    %130 = vector.broadcast %cst_31 : f32 to vector<8x128xf32>
    %131 = arith.addf %130, %129 : vector<8x128xf32>
    %132 = arith.divf %130, %131 : vector<8x128xf32>
    %133 = math.tanh %127 : vector<8x128xf32>
    %134 = vector.extract_strided_slice %132 {offsets = [0, 32], sizes = [8, 32], strides = [1, 1]} : vector<8x128xf32> to vector<8x32xf32>
    %135 = arith.mulf %134, %103 : vector<8x32xf32>
    %136 = vector.extract_strided_slice %132 {offsets = [0, 0], sizes = [8, 32], strides = [1, 1]} : vector<8x128xf32> to vector<8x32xf32>
    %137 = vector.extract_strided_slice %133 {offsets = [0, 64], sizes = [8, 32], strides = [1, 1]} : vector<8x128xf32> to vector<8x32xf32>
    %138 = arith.mulf %136, %137 : vector<8x32xf32>
    %139 = arith.addf %135, %138 : vector<8x32xf32>
    %140 = vector.extract_strided_slice %132 {offsets = [0, 96], sizes = [8, 32], strides = [1, 1]} : vector<8x128xf32> to vector<8x32xf32>
    %141 = math.tanh %139 : vector<8x32xf32>
    %142 = arith.mulf %140, %141 : vector<8x32xf32>
    %143 = vector.extract_strided_slice %28 {offsets = [24, 0], sizes = [8, 128], strides = [1, 1]} : vector<64x128xf32> to vector<8x128xf32>
    %cst_32 = arith.constant dense<0.000000e+00> : vector<8x128xf32>
    %144 = tpu.matmul %124, %29, %cst_32 {dimension_numbers = #tpu.dot_dimension_numbers<[1], [0], [0], [1], [0, 0, 1, 1], [], []>} : vector<8x32xf32>, vector<32x128xf32>, vector<8x128xf32> -> vector<8x128xf32>
    %145 = arith.addf %143, %144 : vector<8x128xf32>
    %146 = arith.negf %145 : vector<8x128xf32>
    %147 = math.exp %146 : vector<8x128xf32>
    %cst_33 = arith.constant 1.000000e+00 : f32
    %148 = vector.broadcast %cst_33 : f32 to vector<8x128xf32>
    %149 = arith.addf %148, %147 : vector<8x128xf32>
    %150 = arith.divf %148, %149 : vector<8x128xf32>
    %151 = math.tanh %145 : vector<8x128xf32>
    %152 = vector.extract_strided_slice %150 {offsets = [0, 32], sizes = [8, 32], strides = [1, 1]} : vector<8x128xf32> to vector<8x32xf32>
    %153 = arith.mulf %152, %121 : vector<8x32xf32>
    %154 = vector.extract_strided_slice %150 {offsets = [0, 0], sizes = [8, 32], strides = [1, 1]} : vector<8x128xf32> to vector<8x32xf32>
    %155 = vector.extract_strided_slice %151 {offsets = [0, 64], sizes = [8, 32], strides = [1, 1]} : vector<8x128xf32> to vector<8x32xf32>
    %156 = arith.mulf %154, %155 : vector<8x32xf32>
    %157 = arith.addf %153, %156 : vector<8x32xf32>
    %158 = vector.extract_strided_slice %150 {offsets = [0, 96], sizes = [8, 32], strides = [1, 1]} : vector<8x128xf32> to vector<8x32xf32>
    %159 = math.tanh %157 : vector<8x32xf32>
    %160 = arith.mulf %158, %159 : vector<8x32xf32>
    %161 = tpu.concatenate %160, %142 in 1 : vector<8x32xf32>, vector<8x32xf32> -> vector<8x64xf32>
    %cst_34 = arith.constant dense<0.000000e+00> : vector<8x128xf32>
    %162 = tpu.matmul %161, %30, %cst_34 {dimension_numbers = #tpu.dot_dimension_numbers<[1], [0], [0], [1], [0, 0, 1, 1], [], []>} : vector<8x64xf32>, vector<64x128xf32>, vector<8x128xf32> -> vector<8x128xf32>
    %163 = arith.addf %162, %33 : vector<8x128xf32>
    %164 = arith.negf %163 : vector<8x128xf32>
    %165 = math.exp %164 : vector<8x128xf32>
    %cst_35 = arith.constant 1.000000e+00 : f32
    %166 = vector.broadcast %cst_35 : f32 to vector<8x128xf32>
    %167 = arith.addf %166, %165 : vector<8x128xf32>
    %168 = arith.divf %166, %167 : vector<8x128xf32>
    %169 = math.tanh %163 : vector<8x128xf32>
    %170 = vector.extract_strided_slice %168 {offsets = [0, 32], sizes = [8, 32], strides = [1, 1]} : vector<8x128xf32> to vector<8x32xf32>
    %171 = arith.mulf %170, %139 : vector<8x32xf32>
    %172 = vector.extract_strided_slice %168 {offsets = [0, 0], sizes = [8, 32], strides = [1, 1]} : vector<8x128xf32> to vector<8x32xf32>
    %173 = vector.extract_strided_slice %169 {offsets = [0, 64], sizes = [8, 32], strides = [1, 1]} : vector<8x128xf32> to vector<8x32xf32>
    %174 = arith.mulf %172, %173 : vector<8x32xf32>
    %175 = arith.addf %171, %174 : vector<8x32xf32>
    %176 = vector.extract_strided_slice %168 {offsets = [0, 96], sizes = [8, 32], strides = [1, 1]} : vector<8x128xf32> to vector<8x32xf32>
    %177 = math.tanh %175 : vector<8x32xf32>
    %178 = arith.mulf %176, %177 : vector<8x32xf32>
    %179 = vector.extract_strided_slice %28 {offsets = [32, 0], sizes = [8, 128], strides = [1, 1]} : vector<64x128xf32> to vector<8x128xf32>
    %cst_36 = arith.constant dense<0.000000e+00> : vector<8x128xf32>
    %180 = tpu.matmul %160, %29, %cst_36 {dimension_numbers = #tpu.dot_dimension_numbers<[1], [0], [0], [1], [0, 0, 1, 1], [], []>} : vector<8x32xf32>, vector<32x128xf32>, vector<8x128xf32> -> vector<8x128xf32>
    %181 = arith.addf %179, %180 : vector<8x128xf32>
    %182 = arith.negf %181 : vector<8x128xf32>
    %183 = math.exp %182 : vector<8x128xf32>
    %cst_37 = arith.constant 1.000000e+00 : f32
    %184 = vector.broadcast %cst_37 : f32 to vector<8x128xf32>
    %185 = arith.addf %184, %183 : vector<8x128xf32>
    %186 = arith.divf %184, %185 : vector<8x128xf32>
    %187 = math.tanh %181 : vector<8x128xf32>
    %188 = vector.extract_strided_slice %186 {offsets = [0, 32], sizes = [8, 32], strides = [1, 1]} : vector<8x128xf32> to vector<8x32xf32>
    %189 = arith.mulf %188, %157 : vector<8x32xf32>
    %190 = vector.extract_strided_slice %186 {offsets = [0, 0], sizes = [8, 32], strides = [1, 1]} : vector<8x128xf32> to vector<8x32xf32>
    %191 = vector.extract_strided_slice %187 {offsets = [0, 64], sizes = [8, 32], strides = [1, 1]} : vector<8x128xf32> to vector<8x32xf32>
    %192 = arith.mulf %190, %191 : vector<8x32xf32>
    %193 = arith.addf %189, %192 : vector<8x32xf32>
    %194 = vector.extract_strided_slice %186 {offsets = [0, 96], sizes = [8, 32], strides = [1, 1]} : vector<8x128xf32> to vector<8x32xf32>
    %195 = math.tanh %193 : vector<8x32xf32>
    %196 = arith.mulf %194, %195 : vector<8x32xf32>
    %197 = tpu.concatenate %196, %178 in 1 : vector<8x32xf32>, vector<8x32xf32> -> vector<8x64xf32>
    %cst_38 = arith.constant dense<0.000000e+00> : vector<8x128xf32>
    %198 = tpu.matmul %197, %30, %cst_38 {dimension_numbers = #tpu.dot_dimension_numbers<[1], [0], [0], [1], [0, 0, 1, 1], [], []>} : vector<8x64xf32>, vector<64x128xf32>, vector<8x128xf32> -> vector<8x128xf32>
    %199 = arith.addf %198, %33 : vector<8x128xf32>
    %200 = arith.negf %199 : vector<8x128xf32>
    %201 = math.exp %200 : vector<8x128xf32>
    %cst_39 = arith.constant 1.000000e+00 : f32
    %202 = vector.broadcast %cst_39 : f32 to vector<8x128xf32>
    %203 = arith.addf %202, %201 : vector<8x128xf32>
    %204 = arith.divf %202, %203 : vector<8x128xf32>
    %205 = math.tanh %199 : vector<8x128xf32>
    %206 = vector.extract_strided_slice %204 {offsets = [0, 32], sizes = [8, 32], strides = [1, 1]} : vector<8x128xf32> to vector<8x32xf32>
    %207 = arith.mulf %206, %175 : vector<8x32xf32>
    %208 = vector.extract_strided_slice %204 {offsets = [0, 0], sizes = [8, 32], strides = [1, 1]} : vector<8x128xf32> to vector<8x32xf32>
    %209 = vector.extract_strided_slice %205 {offsets = [0, 64], sizes = [8, 32], strides = [1, 1]} : vector<8x128xf32> to vector<8x32xf32>
    %210 = arith.mulf %208, %209 : vector<8x32xf32>
    %211 = arith.addf %207, %210 : vector<8x32xf32>
    %212 = vector.extract_strided_slice %204 {offsets = [0, 96], sizes = [8, 32], strides = [1, 1]} : vector<8x128xf32> to vector<8x32xf32>
    %213 = math.tanh %211 : vector<8x32xf32>
    %214 = arith.mulf %212, %213 : vector<8x32xf32>
    %215 = vector.extract_strided_slice %28 {offsets = [40, 0], sizes = [8, 128], strides = [1, 1]} : vector<64x128xf32> to vector<8x128xf32>
    %cst_40 = arith.constant dense<0.000000e+00> : vector<8x128xf32>
    %216 = tpu.matmul %196, %29, %cst_40 {dimension_numbers = #tpu.dot_dimension_numbers<[1], [0], [0], [1], [0, 0, 1, 1], [], []>} : vector<8x32xf32>, vector<32x128xf32>, vector<8x128xf32> -> vector<8x128xf32>
    %217 = arith.addf %215, %216 : vector<8x128xf32>
    %218 = arith.negf %217 : vector<8x128xf32>
    %219 = math.exp %218 : vector<8x128xf32>
    %cst_41 = arith.constant 1.000000e+00 : f32
    %220 = vector.broadcast %cst_41 : f32 to vector<8x128xf32>
    %221 = arith.addf %220, %219 : vector<8x128xf32>
    %222 = arith.divf %220, %221 : vector<8x128xf32>
    %223 = math.tanh %217 : vector<8x128xf32>
    %224 = vector.extract_strided_slice %222 {offsets = [0, 32], sizes = [8, 32], strides = [1, 1]} : vector<8x128xf32> to vector<8x32xf32>
    %225 = arith.mulf %224, %193 : vector<8x32xf32>
    %226 = vector.extract_strided_slice %222 {offsets = [0, 0], sizes = [8, 32], strides = [1, 1]} : vector<8x128xf32> to vector<8x32xf32>
    %227 = vector.extract_strided_slice %223 {offsets = [0, 64], sizes = [8, 32], strides = [1, 1]} : vector<8x128xf32> to vector<8x32xf32>
    %228 = arith.mulf %226, %227 : vector<8x32xf32>
    %229 = arith.addf %225, %228 : vector<8x32xf32>
    %230 = vector.extract_strided_slice %222 {offsets = [0, 96], sizes = [8, 32], strides = [1, 1]} : vector<8x128xf32> to vector<8x32xf32>
    %231 = math.tanh %229 : vector<8x32xf32>
    %232 = arith.mulf %230, %231 : vector<8x32xf32>
    %233 = tpu.concatenate %232, %214 in 1 : vector<8x32xf32>, vector<8x32xf32> -> vector<8x64xf32>
    %cst_42 = arith.constant dense<0.000000e+00> : vector<8x128xf32>
    %234 = tpu.matmul %233, %30, %cst_42 {dimension_numbers = #tpu.dot_dimension_numbers<[1], [0], [0], [1], [0, 0, 1, 1], [], []>} : vector<8x64xf32>, vector<64x128xf32>, vector<8x128xf32> -> vector<8x128xf32>
    %235 = arith.addf %234, %33 : vector<8x128xf32>
    %236 = arith.negf %235 : vector<8x128xf32>
    %237 = math.exp %236 : vector<8x128xf32>
    %cst_43 = arith.constant 1.000000e+00 : f32
    %238 = vector.broadcast %cst_43 : f32 to vector<8x128xf32>
    %239 = arith.addf %238, %237 : vector<8x128xf32>
    %240 = arith.divf %238, %239 : vector<8x128xf32>
    %241 = math.tanh %235 : vector<8x128xf32>
    %242 = vector.extract_strided_slice %240 {offsets = [0, 32], sizes = [8, 32], strides = [1, 1]} : vector<8x128xf32> to vector<8x32xf32>
    %243 = arith.mulf %242, %211 : vector<8x32xf32>
    %244 = vector.extract_strided_slice %240 {offsets = [0, 0], sizes = [8, 32], strides = [1, 1]} : vector<8x128xf32> to vector<8x32xf32>
    %245 = vector.extract_strided_slice %241 {offsets = [0, 64], sizes = [8, 32], strides = [1, 1]} : vector<8x128xf32> to vector<8x32xf32>
    %246 = arith.mulf %244, %245 : vector<8x32xf32>
    %247 = arith.addf %243, %246 : vector<8x32xf32>
    %248 = vector.extract_strided_slice %240 {offsets = [0, 96], sizes = [8, 32], strides = [1, 1]} : vector<8x128xf32> to vector<8x32xf32>
    %249 = math.tanh %247 : vector<8x32xf32>
    %250 = arith.mulf %248, %249 : vector<8x32xf32>
    %251 = vector.extract_strided_slice %28 {offsets = [48, 0], sizes = [8, 128], strides = [1, 1]} : vector<64x128xf32> to vector<8x128xf32>
    %cst_44 = arith.constant dense<0.000000e+00> : vector<8x128xf32>
    %252 = tpu.matmul %232, %29, %cst_44 {dimension_numbers = #tpu.dot_dimension_numbers<[1], [0], [0], [1], [0, 0, 1, 1], [], []>} : vector<8x32xf32>, vector<32x128xf32>, vector<8x128xf32> -> vector<8x128xf32>
    %253 = arith.addf %251, %252 : vector<8x128xf32>
    %254 = arith.negf %253 : vector<8x128xf32>
    %255 = math.exp %254 : vector<8x128xf32>
    %cst_45 = arith.constant 1.000000e+00 : f32
    %256 = vector.broadcast %cst_45 : f32 to vector<8x128xf32>
    %257 = arith.addf %256, %255 : vector<8x128xf32>
    %258 = arith.divf %256, %257 : vector<8x128xf32>
    %259 = math.tanh %253 : vector<8x128xf32>
    %260 = vector.extract_strided_slice %258 {offsets = [0, 32], sizes = [8, 32], strides = [1, 1]} : vector<8x128xf32> to vector<8x32xf32>
    %261 = arith.mulf %260, %229 : vector<8x32xf32>
    %262 = vector.extract_strided_slice %258 {offsets = [0, 0], sizes = [8, 32], strides = [1, 1]} : vector<8x128xf32> to vector<8x32xf32>
    %263 = vector.extract_strided_slice %259 {offsets = [0, 64], sizes = [8, 32], strides = [1, 1]} : vector<8x128xf32> to vector<8x32xf32>
    %264 = arith.mulf %262, %263 : vector<8x32xf32>
    %265 = arith.addf %261, %264 : vector<8x32xf32>
    %266 = vector.extract_strided_slice %258 {offsets = [0, 96], sizes = [8, 32], strides = [1, 1]} : vector<8x128xf32> to vector<8x32xf32>
    %267 = math.tanh %265 : vector<8x32xf32>
    %268 = arith.mulf %266, %267 : vector<8x32xf32>
    %269 = tpu.concatenate %268, %250 in 1 : vector<8x32xf32>, vector<8x32xf32> -> vector<8x64xf32>
    %cst_46 = arith.constant dense<0.000000e+00> : vector<8x128xf32>
    %270 = tpu.matmul %269, %30, %cst_46 {dimension_numbers = #tpu.dot_dimension_numbers<[1], [0], [0], [1], [0, 0, 1, 1], [], []>} : vector<8x64xf32>, vector<64x128xf32>, vector<8x128xf32> -> vector<8x128xf32>
    %271 = arith.addf %270, %33 : vector<8x128xf32>
    %272 = arith.negf %271 : vector<8x128xf32>
    %273 = math.exp %272 : vector<8x128xf32>
    %cst_47 = arith.constant 1.000000e+00 : f32
    %274 = vector.broadcast %cst_47 : f32 to vector<8x128xf32>
    %275 = arith.addf %274, %273 : vector<8x128xf32>
    %276 = arith.divf %274, %275 : vector<8x128xf32>
    %277 = math.tanh %271 : vector<8x128xf32>
    %278 = vector.extract_strided_slice %276 {offsets = [0, 32], sizes = [8, 32], strides = [1, 1]} : vector<8x128xf32> to vector<8x32xf32>
    %279 = arith.mulf %278, %247 : vector<8x32xf32>
    %280 = vector.extract_strided_slice %276 {offsets = [0, 0], sizes = [8, 32], strides = [1, 1]} : vector<8x128xf32> to vector<8x32xf32>
    %281 = vector.extract_strided_slice %277 {offsets = [0, 64], sizes = [8, 32], strides = [1, 1]} : vector<8x128xf32> to vector<8x32xf32>
    %282 = arith.mulf %280, %281 : vector<8x32xf32>
    %283 = arith.addf %279, %282 : vector<8x32xf32>
    %284 = vector.extract_strided_slice %276 {offsets = [0, 96], sizes = [8, 32], strides = [1, 1]} : vector<8x128xf32> to vector<8x32xf32>
    %285 = math.tanh %283 : vector<8x32xf32>
    %286 = arith.mulf %284, %285 : vector<8x32xf32>
    %287 = vector.extract_strided_slice %28 {offsets = [56, 0], sizes = [8, 128], strides = [1, 1]} : vector<64x128xf32> to vector<8x128xf32>
    %cst_48 = arith.constant dense<0.000000e+00> : vector<8x128xf32>
    %288 = tpu.matmul %268, %29, %cst_48 {dimension_numbers = #tpu.dot_dimension_numbers<[1], [0], [0], [1], [0, 0, 1, 1], [], []>} : vector<8x32xf32>, vector<32x128xf32>, vector<8x128xf32> -> vector<8x128xf32>
    %289 = arith.addf %287, %288 : vector<8x128xf32>
    %290 = arith.negf %289 : vector<8x128xf32>
    %291 = math.exp %290 : vector<8x128xf32>
    %cst_49 = arith.constant 1.000000e+00 : f32
    %292 = vector.broadcast %cst_49 : f32 to vector<8x128xf32>
    %293 = arith.addf %292, %291 : vector<8x128xf32>
    %294 = arith.divf %292, %293 : vector<8x128xf32>
    %295 = math.tanh %289 : vector<8x128xf32>
    %296 = vector.extract_strided_slice %294 {offsets = [0, 32], sizes = [8, 32], strides = [1, 1]} : vector<8x128xf32> to vector<8x32xf32>
    %297 = arith.mulf %296, %265 : vector<8x32xf32>
    %298 = vector.extract_strided_slice %294 {offsets = [0, 0], sizes = [8, 32], strides = [1, 1]} : vector<8x128xf32> to vector<8x32xf32>
    %299 = vector.extract_strided_slice %295 {offsets = [0, 64], sizes = [8, 32], strides = [1, 1]} : vector<8x128xf32> to vector<8x32xf32>
    %300 = arith.mulf %298, %299 : vector<8x32xf32>
    %301 = arith.addf %297, %300 : vector<8x32xf32>
    %302 = vector.extract_strided_slice %294 {offsets = [0, 96], sizes = [8, 32], strides = [1, 1]} : vector<8x128xf32> to vector<8x32xf32>
    %303 = math.tanh %301 : vector<8x32xf32>
    %304 = arith.mulf %302, %303 : vector<8x32xf32>
    %305 = tpu.concatenate %304, %286 in 1 : vector<8x32xf32>, vector<8x32xf32> -> vector<8x64xf32>
    %cst_50 = arith.constant dense<0.000000e+00> : vector<8x128xf32>
    %306 = tpu.matmul %305, %30, %cst_50 {dimension_numbers = #tpu.dot_dimension_numbers<[1], [0], [0], [1], [0, 0, 1, 1], [], []>} : vector<8x64xf32>, vector<64x128xf32>, vector<8x128xf32> -> vector<8x128xf32>
    %307 = arith.addf %306, %33 : vector<8x128xf32>
    %308 = arith.negf %307 : vector<8x128xf32>
    %309 = math.exp %308 : vector<8x128xf32>
    %cst_51 = arith.constant 1.000000e+00 : f32
    %310 = vector.broadcast %cst_51 : f32 to vector<8x128xf32>
    %311 = arith.addf %310, %309 : vector<8x128xf32>
    %312 = arith.divf %310, %311 : vector<8x128xf32>
    %313 = math.tanh %307 : vector<8x128xf32>
    %314 = vector.extract_strided_slice %312 {offsets = [0, 32], sizes = [8, 32], strides = [1, 1]} : vector<8x128xf32> to vector<8x32xf32>
    %315 = arith.mulf %314, %283 : vector<8x32xf32>
    %316 = vector.extract_strided_slice %312 {offsets = [0, 0], sizes = [8, 32], strides = [1, 1]} : vector<8x128xf32> to vector<8x32xf32>
    %317 = vector.extract_strided_slice %313 {offsets = [0, 64], sizes = [8, 32], strides = [1, 1]} : vector<8x128xf32> to vector<8x32xf32>
    %318 = arith.mulf %316, %317 : vector<8x32xf32>
    %319 = arith.addf %315, %318 : vector<8x32xf32>
    %320 = vector.extract_strided_slice %312 {offsets = [0, 96], sizes = [8, 32], strides = [1, 1]} : vector<8x128xf32> to vector<8x32xf32>
    %321 = math.tanh %319 : vector<8x32xf32>
    %322 = arith.mulf %320, %321 : vector<8x32xf32>
    %c144 = arith.constant 144 : index
    %c0_52 = arith.constant 0 : index
    %323 = vector.load %arg1[%c144, %c0_52] : memref<208x128xbf16, #tpu.memory_space<vmem>>, vector<32x32xbf16>
    %324 = arith.truncf %322 : vector<8x32xf32> to vector<8x32xbf16>
    %cst_53 = arith.constant dense<0.000000e+00> : vector<8x32xf32>
    %325 = tpu.matmul %324, %323, %cst_53 {dimension_numbers = #tpu.dot_dimension_numbers<[1], [0], [0], [1], [0, 0, 1, 1], [], []>} : vector<8x32xbf16>, vector<32x32xbf16>, vector<8x32xf32> -> vector<8x32xf32>
    %c6 = arith.constant 6 : index
    %c0_54 = arith.constant 0 : index
    %326 = vector.load %arg3[%c6, %c0_54] : memref<8x128xf32, #tpu.memory_space<vmem>>, vector<1x32xf32>
    %327 = vector.broadcast %326 : vector<1x32xf32> to vector<8x32xf32>
    %328 = arith.addf %325, %327 : vector<8x32xf32>
    %cst_55 = arith.constant 0.000000e+00 : f32
    %329 = vector.broadcast %cst_55 : f32 to vector<8x32xf32>
    %330 = arith.maximumf %328, %329 : vector<8x32xf32>
    %c176 = arith.constant 176 : index
    %c0_56 = arith.constant 0 : index
    %331 = vector.load %arg1[%c176, %c0_56] : memref<208x128xbf16, #tpu.memory_space<vmem>>, vector<32x128xbf16>
    %332 = arith.truncf %330 : vector<8x32xf32> to vector<8x32xbf16>
    %cst_57 = arith.constant dense<0.000000e+00> : vector<8x128xf32>
    %333 = tpu.matmul %332, %331, %cst_57 {dimension_numbers = #tpu.dot_dimension_numbers<[1], [0], [0], [1], [0, 0, 1, 1], [], []>} : vector<8x32xbf16>, vector<32x128xbf16>, vector<8x128xf32> -> vector<8x128xf32>
    %c7 = arith.constant 7 : index
    %c0_58 = arith.constant 0 : index
    %334 = vector.load %arg3[%c7, %c0_58] : memref<8x128xf32, #tpu.memory_space<vmem>>, vector<1x128xf32>
    %335 = vector.broadcast %334 : vector<1x128xf32> to vector<8x128xf32>
    %336 = arith.addf %333, %335 : vector<8x128xf32>
    %c0_59 = arith.constant 0 : index
    %c0_60 = arith.constant 0 : index
    %337 = vector.load %arg4[%c0_59, %c0_60] : memref<8x128xf32, #tpu.memory_space<vmem>>, vector<8x128xf32>
    tpu.vector_store %arg4[%c0_59, %c0_60], %336 {strides = array<i32>} : memref<8x128xf32, #tpu.memory_space<vmem>>, vector<8x128xf32>,
    return
  }
}

</mosaic_0001>

<llo_original>
// kernel: tpu_custom_call.1
$region0: #{tpu_custom_call.1}
  #allocation0 [shape = 'u32[]', space=smem, size = 0x4, offset = 0x4, fixed_abs, tag = 'smem constant byte address 0x4 - core index']
  #allocation1 [shape = 'u32[144,128]{1,0:T(1,128)}', space=vmem, size = 0x12000, scoped, tag = 'internal scratch']
  %s0 = inlined_call_operand.vmem [shape: f32[64,48], index: 0, kind: input, shape index: {}]
  %s1 = inlined_call_operand.vmem [shape: bf16[208,128], index: 1, kind: input, shape index: {}]
  %s2 = inlined_call_operand.hbm [shape: f32[96,128], index: 2, kind: input, shape index: {}]
  %s3 = inlined_call_operand.vmem [shape: f32[8,128], index: 3, kind: input, shape index: {}]
  %s4 = inlined_call_operand.hbm [shape: f32[8,128], index: 4, kind: output, shape index: {}]
  %s5 = sld [smem:[#allocation0]]
  $region30: #{tpu_custom_call.1} parent=0
    _
  %s7 = ssub.s32 1, %s5
  %s8 = scalar_select 0, %s7, %s5
  $region1: #{tpu_custom_call.1} parent=0
    #allocation2 [shape = 'u8[49152]{0}', space=vmem, size = 0xc000, scoped, tag = 'input window, operand 2, single buffered']
    #allocation3 [shape = 's32[1]{0}', space=sflag, size = 0x4, scoped, tag = 'scoped memory for tpu_custom_call.1']
    #allocation4 [shape = 's32[1]{0}', space=sflag, size = 0x4, scoped, tag = 'scoped memory for tpu_custom_call.1']
    #allocation5 [shape = 'u8[4096]{0}', space=vmem, size = 0x1000, scoped, tag = 'output window, operand 0, single buffered']
    %9 = vsyncpa [#allocation3], 0
    %10 = vsyncpa [#allocation4], 0
    // Predicated region
    $region2: #{tpu_custom_call.1} parent=1 // pred_check
      _
    $region3: #{tpu_custom_call.1} parent=1 // pred_check_branch
      %12 = sbr.rel (0) target = $region5
    $region4: #{tpu_custom_call.1} parent=1 // pred_region
      _
    $region5: #{tpu_custom_call.1} parent=1 // pred_fallthru
      _
    // Predicated region
    $region6: #{tpu_custom_call.1} parent=1 // pred_check
      _
    $region7: #{tpu_custom_call.1} parent=1 // pred_check_branch
      %14 = sbr.rel (0) target = $region9
    $region8: #{tpu_custom_call.1} parent=1 // pred_region
      _
    $region9: #{tpu_custom_call.1} parent=1 // pred_fallthru
      _
    // Predicated region
    $region10: #{tpu_custom_call.1} parent=1 // pred_check
      _
    $region11: #{tpu_custom_call.1} parent=1 // pred_check_branch
      %16 = sbr.rel (0) target = $region13
    $region12: #{tpu_custom_call.1} parent=1 // pred_region
      %s18 = ssub.s32 1536, 1536
      %19 = vsyncadd [#allocation3], %s18
      %s20 = sshll.u32 [#allocation2], 4
      %s21 = int_to_ptr.vmem [resolvable:$true] %s20
      %26 = dma.hbm_to_vmem [thread:$0]  %s2, 1536, %s21, [#allocation3], 128, 128, 8
    $region13: #{tpu_custom_call.1} parent=1 // pred_fallthru
      _
    // Predicated region
    $region14: #{tpu_custom_call.1} parent=1 // pred_check
      _
    $region15: #{tpu_custom_call.1} parent=1 // pred_check_branch
      %28 = sbr.rel (0) target = $region17
    $region16: #{tpu_custom_call.1} parent=1 // pred_region
      _
    $region17: #{tpu_custom_call.1} parent=1 // pred_fallthru
      _
    // Predicated region
    $region18: #{tpu_custom_call.1} parent=1 // pred_check
      _
    $region19: #{tpu_custom_call.1} parent=1 // pred_check_branch
      %30 = sbr.rel (0) target = $region21
    $region20: #{tpu_custom_call.1} parent=1 // pred_region
      %31 = dma.done [#allocation3], 1536
    $region21: #{tpu_custom_call.1} parent=1 // pred_fallthru
      _
    %v33 = vld [vmem:[%s0] sm:$0xff]
    %v34 = vld [vmem:[%s0 + $0x8] sm:$0xff]
    %v35 = vld [vmem:[%s0 + $0x10] sm:$0xff]
    %v36 = vld [vmem:[%s0 + $0x18] sm:$0xff]
    %v37 = vld [vmem:[%s0 + $0x20] sm:$0xff]
    %v38 = vld [vmem:[%s0 + $0x28] sm:$0xff]
    %v39 = vld [vmem:[%s0 + $0x30] sm:$0xff]
    %v40 = vld [vmem:[%s0 + $0x38] sm:$0xff]
    %v41 = vld [vmem:[%s1] sm:$0xf]
    %v42 = vld [vmem:[%s1 + $0x4] sm:$0xf]
    %v43 = vld [vmem:[%s1 + $0x8] sm:$0xf]
    %v44 = vld [vmem:[%s1 + $0xc] sm:$0xf]
    %v45 = vld [vmem:[%s1 + $0x10] sm:$0xf]
    %v46 = vld [vmem:[%s1 + $0x14] sm:$0xf]
    %v47 = vpack.c.bf16 %v34, %v33
    %v48 = vpack.c.bf16 %v36, %v35
    %v49 = vpack.c.bf16 %v38, %v37
    %v50 = vpack.c.bf16 %v40, %v39
    %v57 = vunpack.c.l.b16 %v41
    %v58 = vunpack.c.l.b16 %v42
    %v59 = vunpack.c.l.b16 %v43
    %v60 = vunpack.c.l.b16 %v44
    %v61 = vunpack.c.l.b16 %v45
    %v62 = vunpack.c.l.b16 %v46
    %v63 = vpack.c.b16 %v58, %v57
    %v64 = vpack.c.b16 %v60, %v59
    %v65 = vpack.c.b16 %v62, %v61
    %vm69 = vcmask 392192
    %v71 = vsel %vm69, %v47, 0
    %v74 = vsel %vm69, %v48, 0
    %v77 = vsel %vm69, %v49, 0
    %v80 = vsel %vm69, %v50, 0
    %82 = vmatprep.subr.bf16.mxu0 0
    %83 = vmatpush1.bf16.msra.mxu0 %v63
    %84 = vmatprep.subr.bf16.mxu0 0
    %85 = vmatpush1.bf16.msra.mxu0 %v64
    %86 = vmatprep.subr.bf16.mxu0 0
    %87 = vmatpush1.bf16.msra.mxu0 %v65
    %88 = vmatprep.subr.bf16.mxu0 0
    %89 = vmatpush1.bf16.msra.mxu0 0
    %90 = vmatprep.subr.bf16.mxu0 0
    %91 = vmatpush1.bf16.msra.mxu0 0
    %92 = vmatprep.subr.bf16.mxu0 0
    %93 = vmatpush1.bf16.msra.mxu0 0
    %94 = vmatprep.subr.bf16.mxu0 0
    %95 = vmatpush1.bf16.msra.mxu0 0
    %96 = vmatprep.subr.bf16.mxu0 0
    %97 = vmatpush1.bf16.msra.mxu0 0
    %98 = vmatprep.subr.bf16.mxu0 0
    %99 = vmatpush1.bf16.msra.mxu0 0
    %100 = vmatprep.subr.bf16.mxu0 0
    %101 = vmatpush1.bf16.msra.mxu0 0
    %102 = vmatprep.subr.bf16.mxu0 0
    %103 = vmatpush1.bf16.msra.mxu0 0
    %104 = vmatprep.subr.bf16.mxu0 0
    %105 = vmatpush1.bf16.msra.mxu0 0
    %106 = vmatprep.subr.bf16.mxu0 0
    %107 = vmatpush1.bf16.msra.mxu0 0
    %108 = vmatprep.subr.bf16.mxu0 0
    %109 = vmatpush1.bf16.msra.mxu0 0
    %110 = vmatprep.subr.bf16.mxu0 0
    %111 = vmatpush1.bf16.msra.mxu0 0
    %112 = vmatprep.subr.bf16.mxu0 0
    %113 = vmatpush1.bf16.msra.mxu0 0
    %114 = vmatprep.mubr.bf16.mxu0 0
    %115 = vmatmul.mubr.bf16.gmra.mrb[0].mxu0 %v71
    %v116 = vpop.f32.mrb[0].mxu0
    %v117 = vadd.f32 0.0, %v116
    %v118 = vpop.f32.mrb[0].mxu0
    %v119 = vpop.f32.mrb[0].mxu0
    %v120 = vadd.f32 0.0, %v119
    %v121 = vpop.f32.mrb[0].mxu0
    %122 = vmatprep.mubr.bf16.mxu0 0
    %123 = vmatmul.mubr.bf16.gmra.mrb[0].mxu0 %v74
    %v124 = vpop.f32.mrb[0].mxu0
    %v125 = vadd.f32 0.0, %v124
    %v126 = vpop.f32.mrb[0].mxu0
    %v127 = vpop.f32.mrb[0].mxu0
    %v128 = vadd.f32 0.0, %v127
    %v129 = vpop.f32.mrb[0].mxu0
    %130 = vmatprep.mubr.bf16.mxu0 0
    %131 = vmatmul.mubr.bf16.gmra.mrb[0].mxu0 %v77
    %v132 = vpop.f32.mrb[0].mxu0
    %v133 = vadd.f32 0.0, %v132
    %v134 = vpop.f32.mrb[0].mxu0
    %v135 = vpop.f32.mrb[0].mxu0
    %v136 = vadd.f32 0.0, %v135
    %v137 = vpop.f32.mrb[0].mxu0
    %138 = vmatprep.mubr.bf16.mxu0 0
    %139 = vmatmul.mubr.bf16.gmra.mrb[0].mxu0 %v80
    %v140 = vpop.f32.mrb[0].mxu0
    %v141 = vadd.f32 0.0, %v140
    %v142 = vpop.f32.mrb[0].mxu0
    %v143 = vpop.f32.mrb[0].mxu0
    %v144 = vadd.f32 0.0, %v143
    %v145 = vpop.f32.mrb[0].mxu0
    %146 = vdwg.mxu0
    %v147 = vld [vmem:[%s3] sm:$0x1]
    %v148 = vlaneseq
    %v149 = vshrl.u32 %v148, 7
    %v150 = vsub.s32 0, %v149
    %v151 = vrot.slane %v147, %v150
    %v152 = vmul.f32 %v117, %v151
    %v153 = vmul.f32 %v120, %v151
    %v154 = vmul.f32 %v125, %v151
    %v155 = vmul.f32 %v128, %v151
    %v156 = vmul.f32 %v133, %v151
    %v157 = vmul.f32 %v136, %v151
    %v158 = vmul.f32 %v141, %v151
    %v159 = vmul.f32 %v144, %v151
    %v160 = vld [vmem:[%s3 + $0x1] sm:$0x1]
    %v161 = vlaneseq
    %v162 = vshrl.u32 %v161, 7
    %v163 = vsub.s32 0, %v162
    %v164 = vrot.slane %v160, %v163
    %v165 = vadd.f32 %v152, %v164
    %v166 = vadd.f32 %v153, %v164
    %v167 = vadd.f32 %v154, %v164
    %v168 = vadd.f32 %v155, %v164
    %v169 = vadd.f32 %v156, %v164
    %v170 = vadd.f32 %v157, %v164
    %v171 = vadd.f32 %v158, %v164
    %v172 = vadd.f32 %v159, %v164
    %v173 = vmax.f32 %v165, 0.0
    %v174 = vmax.f32 %v166, 0.0
    %v175 = vmax.f32 %v167, 0.0
    %v176 = vmax.f32 %v168, 0.0
    %v177 = vmax.f32 %v169, 0.0
    %v178 = vmax.f32 %v170, 0.0
    %v179 = vmax.f32 %v171, 0.0
    %v180 = vmax.f32 %v172, 0.0
    %v181 = vld [vmem:[%s1 + $0x18] sm:$0xf]
    %v182 = vld [vmem:[%s1 + $0x1c] sm:$0xf]
    %v183 = vld [vmem:[%s1 + $0x20] sm:$0xf]
    %v184 = vld [vmem:[%s1 + $0x24] sm:$0xf]
    %v185 = vld [vmem:[%s1 + $0x28] sm:$0xf]
    %v186 = vld [vmem:[%s1 + $0x2c] sm:$0xf]
    %v187 = vld [vmem:[%s1 + $0x30] sm:$0xf]
    %v188 = vld [vmem:[%s1 + $0x34] sm:$0xf]
    %v189 = vpack.c.bf16 %v174, %v173
    %v190 = vpack.c.bf16 %v176, %v175
    %v191 = vpack.c.bf16 %v178, %v177
    %v192 = vpack.c.bf16 %v180, %v179
    %v201 = vunpack.c.l.b16 %v181
    %v202 = vunpack.c.l.b16 %v182
    %v203 = vunpack.c.l.b16 %v183
    %v204 = vunpack.c.l.b16 %v184
    %v205 = vunpack.c.l.b16 %v185
    %v206 = vunpack.c.l.b16 %v186
    %v207 = vunpack.c.l.b16 %v187
    %v208 = vunpack.c.l.b16 %v188
    %v209 = vpack.c.b16 %v202, %v201
    %v210 = vpack.c.b16 %v204, %v203
    %v211 = vpack.c.b16 %v206, %v205
    %v212 = vpack.c.b16 %v208, %v207
    %vm217 = vcmask 523264
    %v219 = vsel %vm217, %v189, 0
    %v222 = vsel %vm217, %v190, 0
    %v225 = vsel %vm217, %v191, 0
    %v228 = vsel %vm217, %v192, 0
    %230 = vmatprep.subr.bf16.mxu0 0
    %231 = vmatpush1.bf16.msra.mxu0 %v209
    %232 = vmatprep.subr.bf16.mxu0 0
    %233 = vmatpush1.bf16.msra.mxu0 %v210
    %234 = vmatprep.subr.bf16.mxu0 0
    %235 = vmatpush1.bf16.msra.mxu0 %v211
    %236 = vmatprep.subr.bf16.mxu0 0
    %237 = vmatpush1.bf16.msra.mxu0 %v212
    %238 = vmatprep.subr.bf16.mxu0 0
    %239 = vmatpush1.bf16.msra.mxu0 0
    %240 = vmatprep.subr.bf16.mxu0 0
    %241 = vmatpush1.bf16.msra.mxu0 0
    %242 = vmatprep.subr.bf16.mxu0 0
    %243 = vmatpush1.bf16.msra.mxu0 0
    %244 = vmatprep.subr.bf16.mxu0 0
    %245 = vmatpush1.bf16.msra.mxu0 0
    %246 = vmatprep.subr.bf16.mxu0 0
    %247 = vmatpush1.bf16.msra.mxu0 0
    %248 = vmatprep.subr.bf16.mxu0 0
    %249 = vmatpush1.bf16.msra.mxu0 0
    %250 = vmatprep.subr.bf16.mxu0 0
    %251 = vmatpush1.bf16.msra.mxu0 0
    %252 = vmatprep.subr.bf16.mxu0 0
    %253 = vmatpush1.bf16.msra.mxu0 0
    %254 = vmatprep.subr.bf16.mxu0 0
    %255 = vmatpush1.bf16.msra.mxu0 0
    %256 = vmatprep.subr.bf16.mxu0 0
    %257 = vmatpush1.bf16.msra.mxu0 0
    %258 = vmatprep.subr.bf16.mxu0 0
    %259 = vmatpush1.bf16.msra.mxu0 0
    %260 = vmatprep.subr.bf16.mxu0 0
    %261 = vmatpush1.bf16.msra.mxu0 0
    %262 = vmatprep.mubr.bf16.mxu0 0
    %263 = vmatmul.mubr.bf16.gmra.mrb[0].mxu0 %v219
    %v264 = vpop.f32.mrb[0].mxu0
    %v265 = vadd.f32 0.0, %v264
    %v266 = vpop.f32.mrb[0].mxu0
    %v267 = vpop.f32.mrb[0].mxu0
    %v268 = vadd.f32 0.0, %v267
    %v269 = vpop.f32.mrb[0].mxu0
    %270 = vmatprep.mubr.bf16.mxu0 0
    %271 = vmatmul.mubr.bf16.gmra.mrb[0].mxu0 %v222
    %v272 = vpop.f32.mrb[0].mxu0
    %v273 = vadd.f32 0.0, %v272
    %v274 = vpop.f32.mrb[0].mxu0
    %v275 = vpop.f32.mrb[0].mxu0
    %v276 = vadd.f32 0.0, %v275
    %v277 = vpop.f32.mrb[0].mxu0
    %278 = vmatprep.mubr.bf16.mxu0 0
    %279 = vmatmul.mubr.bf16.gmra.mrb[0].mxu0 %v225
    %v280 = vpop.f32.mrb[0].mxu0
    %v281 = vadd.f32 0.0, %v280
    %v282 = vpop.f32.mrb[0].mxu0
    %v283 = vpop.f32.mrb[0].mxu0
    %v284 = vadd.f32 0.0, %v283
    %v285 = vpop.f32.mrb[0].mxu0
    %286 = vmatprep.mubr.bf16.mxu0 0
    %287 = vmatmul.mubr.bf16.gmra.mrb[0].mxu0 %v228
    %v288 = vpop.f32.mrb[0].mxu0
    %v289 = vadd.f32 0.0, %v288
    %v290 = vpop.f32.mrb[0].mxu0
    %v291 = vpop.f32.mrb[0].mxu0
    %v292 = vadd.f32 0.0, %v291
    %v293 = vpop.f32.mrb[0].mxu0
    %294 = vdwg.mxu0
    %v295 = vld [vmem:[%s3 + $0x2] sm:$0x1]
    %v296 = vlaneseq
    %v297 = vshrl.u32 %v296, 7
    %v298 = vsub.s32 0, %v297
    %v299 = vrot.slane %v295, %v298
    %v300 = vmul.f32 %v265, %v299
    %v301 = vmul.f32 %v268, %v299
    %v302 = vmul.f32 %v273, %v299
    %v303 = vmul.f32 %v276, %v299
    %v304 = vmul.f32 %v281, %v299
    %v305 = vmul.f32 %v284, %v299
    %v306 = vmul.f32 %v289, %v299
    %v307 = vmul.f32 %v292, %v299
    %v308 = vld [vmem:[%s3 + $0x3] sm:$0x1]
    %v309 = vlaneseq
    %v310 = vshrl.u32 %v309, 7
    %v311 = vsub.s32 0, %v310
    %v312 = vrot.slane %v308, %v311
    %v313 = vadd.f32 %v300, %v312
    %v314 = vadd.f32 %v301, %v312
    %v315 = vadd.f32 %v302, %v312
    %v316 = vadd.f32 %v303, %v312
    %v317 = vadd.f32 %v304, %v312
    %v318 = vadd.f32 %v305, %v312
    %v319 = vadd.f32 %v306, %v312
    %v320 = vadd.f32 %v307, %v312
    %v321 = vmax.f32 %v313, 0.0
    %v322 = vmax.f32 %v314, 0.0
    %v323 = vmax.f32 %v315, 0.0
    %v324 = vmax.f32 %v316, 0.0
    %v325 = vmax.f32 %v317, 0.0
    %v326 = vmax.f32 %v318, 0.0
    %v327 = vmax.f32 %v319, 0.0
    %v328 = vmax.f32 %v320, 0.0
    %v329 = vld [vmem:[%s1 + $0x38] sm:$0xf]
    %v330 = vld [vmem:[%s1 + $0x3c] sm:$0xf]
    %v331 = vld [vmem:[%s1 + $0x40] sm:$0xf]
    %v332 = vld [vmem:[%s1 + $0x44] sm:$0xf]
    %v333 = vpack.c.bf16 %v322, %v321
    %v334 = vpack.c.bf16 %v324, %v323
    %v335 = vpack.c.bf16 %v326, %v325
    %v336 = vpack.c.bf16 %v328, %v327
    %v337 = vld [vmem:[%s3 + $0x4] sm:$0x1]
    %v338 = vlaneseq
    %v339 = vshrl.u32 %v338, 7
    %v340 = vsub.s32 0, %v339
    %v341 = vrot.slane %v337, %v340
    %v346 = vunpack.c.l.b16 %v329
    %v347 = vunpack.c.l.b16 %v330
    %v348 = vunpack.c.l.b16 %v331
    %v349 = vunpack.c.l.b16 %v332
    %v350 = vpack.c.b16 %v347, %v346
    %v351 = vpack.c.b16 %v349, %v348
    %vm354 = vcmask 261120
    %v356 = vsel %vm354, %v333, 0
    %v359 = vsel %vm354, %v334, 0
    %v362 = vsel %vm354, %v335, 0
    %v365 = vsel %vm354, %v336, 0
    %367 = vmatprep.subr.bf16.mxu0 0
    %368 = vmatpush1.bf16.msra.mxu0 %v350
    %369 = vmatprep.subr.bf16.mxu0 0
    %370 = vmatpush1.bf16.msra.mxu0 %v351
    %371 = vmatprep.subr.bf16.mxu0 0
    %372 = vmatpush1.bf16.msra.mxu0 0
    %373 = vmatprep.subr.bf16.mxu0 0
    %374 = vmatpush1.bf16.msra.mxu0 0
    %375 = vmatprep.subr.bf16.mxu0 0
    %376 = vmatpush1.bf16.msra.mxu0 0
    %377 = vmatprep.subr.bf16.mxu0 0
    %378 = vmatpush1.bf16.msra.mxu0 0
    %379 = vmatprep.subr.bf16.mxu0 0
    %380 = vmatpush1.bf16.msra.mxu0 0
    %381 = vmatprep.subr.bf16.mxu0 0
    %382 = vmatpush1.bf16.msra.mxu0 0
    %383 = vmatprep.subr.bf16.mxu0 0
    %384 = vmatpush1.bf16.msra.mxu0 0
    %385 = vmatprep.subr.bf16.mxu0 0
    %386 = vmatpush1.bf16.msra.mxu0 0
    %387 = vmatprep.subr.bf16.mxu0 0
    %388 = vmatpush1.bf16.msra.mxu0 0
    %389 = vmatprep.subr.bf16.mxu0 0
    %390 = vmatpush1.bf16.msra.mxu0 0
    %391 = vmatprep.subr.bf16.mxu0 0
    %392 = vmatpush1.bf16.msra.mxu0 0
    %393 = vmatprep.subr.bf16.mxu0 0
    %394 = vmatpush1.bf16.msra.mxu0 0
    %395 = vmatprep.subr.bf16.mxu0 0
    %396 = vmatpush1.bf16.msra.mxu0 0
    %397 = vmatprep.subr.bf16.mxu0 0
    %398 = vmatpush1.bf16.msra.mxu0 0
    %399 = vmatprep.mubr.bf16.mxu0 0
    %400 = vmatmul.mubr.bf16.gmra.mrb[0].mxu0 %v356
    %v401 = vpop.f32.mrb[0].mxu0
    %v402 = vadd.f32 %v341, %v401
    %v403 = vpop.f32.mrb[0].mxu0
    %v404 = vpop.f32.mrb[0].mxu0
    %v405 = vadd.f32 %v341, %v404
    %v406 = vpop.f32.mrb[0].mxu0
    %407 = vmatprep.mubr.bf16.mxu0 0
    %408 = vmatmul.mubr.bf16.gmra.mrb[0].mxu0 %v359
    %v409 = vpop.f32.mrb[0].mxu0
    %v410 = vadd.f32 %v341, %v409
    %v411 = vpop.f32.mrb[0].mxu0
    %v412 = vpop.f32.mrb[0].mxu0
    %v413 = vadd.f32 %v341, %v412
    %v414 = vpop.f32.mrb[0].mxu0
    %415 = vmatprep.mubr.bf16.mxu0 0
    %416 = vmatmul.mubr.bf16.gmra.mrb[0].mxu0 %v362
    %v417 = vpop.f32.mrb[0].mxu0
    %v418 = vadd.f32 %v341, %v417
    %v419 = vpop.f32.mrb[0].mxu0
    %v420 = vpop.f32.mrb[0].mxu0
    %v421 = vadd.f32 %v341, %v420
    %v422 = vpop.f32.mrb[0].mxu0
    %423 = vmatprep.mubr.bf16.mxu0 0
    %424 = vmatmul.mubr.bf16.gmra.mrb[0].mxu0 %v365
    %v425 = vpop.f32.mrb[0].mxu0
    %v426 = vadd.f32 %v341, %v425
    %v427 = vpop.f32.mrb[0].mxu0
    %v428 = vpop.f32.mrb[0].mxu0
    %v429 = vadd.f32 %v341, %v428
    %v430 = vpop.f32.mrb[0].mxu0
    %431 = vdwg.mxu0
    %v432 = vld [vmem:[#allocation2] sm:$0xff]
    %v433 = vld [vmem:[#allocation2 + $0x8] sm:$0xff]
    %v434 = vld [vmem:[#allocation2 + $0x10] sm:$0xff]
    %v435 = vld [vmem:[#allocation2 + $0x18] sm:$0xff]
    %v436 = vld [vmem:[#allocation2 + $0x20] sm:$0xff]
    %v437 = vld [vmem:[#allocation2 + $0x28] sm:$0xff]
    %v438 = vld [vmem:[#allocation2 + $0x30] sm:$0xff]
    %v439 = vld [vmem:[#allocation2 + $0x38] sm:$0xff]
    %v440 = vld [vmem:[#allocation2 + $0x40] sm:$0xff]
    %v441 = vld [vmem:[#allocation2 + $0x48] sm:$0xff]
    %v442 = vld [vmem:[#allocation2 + $0x50] sm:$0xff]
    %v443 = vld [vmem:[#allocation2 + $0x58] sm:$0xff]
    %v444 = vld [vmem:[%s3 + $0x5] sm:$0x1]
    %v445 = vlaneseq
    %v446 = vshrl.u32 %v445, 7
    %v447 = vsub.s32 0, %v446
    %v448 = vrot.slane %v444, %v447
    %v450 = vsel %vm354, 0.0, 0
    %452 = vmatprep.subr.mxu0 0.0
    %453 = vmatpush1.msra.mxu0 %v432
    %454 = vmatprep.subr.mxu0 0.0
    %455 = vmatpush1.msra.mxu0 %v433
    %456 = vmatprep.subr.mxu0 0.0
    %457 = vmatpush1.msra.mxu0 %v434
    %458 = vmatprep.subr.mxu0 0.0
    %459 = vmatpush1.msra.mxu0 %v435
    %460 = vmatprep.subr.mxu0 0.0
    %461 = vmatpush1.msra.mxu0 0.0
    %462 = vmatprep.subr.mxu0 0.0
    %463 = vmatpush1.msra.mxu0 0.0
    %464 = vmatprep.subr.mxu0 0.0
    %465 = vmatpush1.msra.mxu0 0.0
    %466 = vmatprep.subr.mxu0 0.0
    %467 = vmatpush1.msra.mxu0 0.0
    %468 = vmatprep.subr.mxu0 0.0
    %469 = vmatpush1.msra.mxu0 0.0
    %470 = vmatprep.subr.mxu0 0.0
    %471 = vmatpush1.msra.mxu0 0.0
    %472 = vmatprep.subr.mxu0 0.0
    %473 = vmatpush1.msra.mxu0 0.0
    %474 = vmatprep.subr.mxu0 0.0
    %475 = vmatpush1.msra.mxu0 0.0
    %476 = vmatprep.subr.mxu0 0.0
    %477 = vmatpush1.msra.mxu0 0.0
    %478 = vmatprep.subr.mxu0 0.0
    %479 = vmatpush1.msra.mxu0 0.0
    %480 = vmatprep.subr.mxu0 0.0
    %481 = vmatpush1.msra.mxu0 0.0
    %482 = vmatprep.subr.mxu0 0.0
    %483 = vmatpush1.msra.mxu0 0.0
    %484 = vmatprep.subr.mxu0 0.0
    %485 = vmatpush1.msra.mxu0 0.0
    %486 = vmatprep.subr.mxu0 0.0
    %487 = vmatpush1.msra.mxu0 0.0
    %488 = vmatprep.subr.mxu0 0.0
    %489 = vmatpush1.msra.mxu0 0.0
    %490 = vmatprep.subr.mxu0 0.0
    %491 = vmatpush1.msra.mxu0 0.0
    %492 = vmatprep.subr.mxu0 0.0
    %493 = vmatpush1.msra.mxu0 0.0
    %494 = vmatprep.subr.mxu0 0.0
    %495 = vmatpush1.msra.mxu0 0.0
    %496 = vmatprep.subr.mxu0 0.0
    %497 = vmatpush1.msra.mxu0 0.0
    %498 = vmatprep.subr.mxu0 0.0
    %499 = vmatpush1.msra.mxu0 0.0
    %500 = vmatprep.subr.mxu0 0.0
    %501 = vmatpush1.msra.mxu0 0.0
    %502 = vmatprep.subr.mxu0 0.0
    %503 = vmatpush1.msra.mxu0 0.0
    %504 = vmatprep.subr.mxu0 0.0
    %505 = vmatpush1.msra.mxu0 0.0
    %506 = vmatprep.subr.mxu0 0.0
    %507 = vmatpush1.msra.mxu0 0.0
    %508 = vmatprep.subr.mxu0 0.0
    %509 = vmatpush1.msra.mxu0 0.0
    %510 = vmatprep.subr.mxu0 0.0
    %511 = vmatpush1.msra.mxu0 0.0
    %512 = vmatprep.subr.mxu0 0.0
    %513 = vmatpush1.msra.mxu0 0.0
    %514 = vmatprep.subr.mxu0 0.0
    %515 = vmatpush1.msra.mxu0 0.0
    %516 = vmatprep.mubr.f32.mxu0 0.0
    %517 = vmatmul.mubr.f32.gmra.mrb[0].mxu0 %v450
    %v518 = vpop.f32.mrb[0].mxu0
    %v519 = vadd.f32 0.0, %v518
    %v520 = vpop.f32.mrb[0].mxu0
    %521 = vdwg.mxu0
    %v522 = vadd.f32 %v402, %v519
    %v523 = vxor.u32 %v522, 2147483648
    %v524 = vmul.f32 %v523, 1.442695
    %v525 = vpow.pop %v524
    %v526 = vadd.f32 %v525, 1.0
    %v527 = vrcp.pop %v526
    %v528 = vmul.f32 1.0, %v527
    %v529 = vtanh.pop %v522
    %v530 = vmul.f32 %v528, 0.0
    %532 = vrot.lane.b32.xlu0 %v529, 64
    %v533 = vpop.permute.xlu0 %532
    %v535 = vmul.f32 %v528, %v533
    %537 = vrot.lane.b32.xlu0 %v535, 32
    %v538 = vpop.permute.xlu0 %537
    %v540 = vadd.f32 %v530, %v538
    %v541 = vtanh.pop %v540
    %543 = vrot.lane.b32.xlu0 %v541, 64
    %v544 = vpop.permute.xlu0 %543
    %v546 = vmul.f32 %v528, %v544
    %548 = vrot.lane.b32.xlu0 %v546, 32
    %v549 = vpop.permute.xlu0 %548
    %v551 = vsel %vm354, %v549, 0.0
    %v553 = vsel %vm217, %v551, 0
    %555 = vmatprep.subr.mxu0 0.0
    %556 = vmatpush1.msra.mxu0 %v436
    %557 = vmatprep.subr.mxu0 0.0
    %558 = vmatpush1.msra.mxu0 %v437
    %559 = vmatprep.subr.mxu0 0.0
    %560 = vmatpush1.msra.mxu0 %v438
    %561 = vmatprep.subr.mxu0 0.0
    %562 = vmatpush1.msra.mxu0 %v439
    %563 = vmatprep.subr.mxu0 0.0
    %564 = vmatpush1.msra.mxu0 %v440
    %565 = vmatprep.subr.mxu0 0.0
    %566 = vmatpush1.msra.mxu0 %v441
    %567 = vmatprep.subr.mxu0 0.0
    %568 = vmatpush1.msra.mxu0 %v442
    %569 = vmatprep.subr.mxu0 0.0
    %570 = vmatpush1.msra.mxu0 %v443
    %571 = vmatprep.subr.mxu0 0.0
    %572 = vmatpush1.msra.mxu0 0.0
    %573 = vmatprep.subr.mxu0 0.0
    %574 = vmatpush1.msra.mxu0 0.0
    %575 = vmatprep.subr.mxu0 0.0
    %576 = vmatpush1.msra.mxu0 0.0
    %577 = vmatprep.subr.mxu0 0.0
    %578 = vmatpush1.msra.mxu0 0.0
    %579 = vmatprep.subr.mxu0 0.0
    %580 = vmatpush1.msra.mxu0 0.0
    %581 = vmatprep.subr.mxu0 0.0
    %582 = vmatpush1.msra.mxu0 0.0
    %583 = vmatprep.subr.mxu0 0.0
    %584 = vmatpush1.msra.mxu0 0.0
    %585 = vmatprep.subr.mxu0 0.0
    %586 = vmatpush1.msra.mxu0 0.0
    %587 = vmatprep.subr.mxu0 0.0
    %588 = vmatpush1.msra.mxu0 0.0
    %589 = vmatprep.subr.mxu0 0.0
    %590 = vmatpush1.msra.mxu0 0.0
    %591 = vmatprep.subr.mxu0 0.0
    %592 = vmatpush1.msra.mxu0 0.0
    %593 = vmatprep.subr.mxu0 0.0
    %594 = vmatpush1.msra.mxu0 0.0
    %595 = vmatprep.subr.mxu0 0.0
    %596 = vmatpush1.msra.mxu0 0.0
    %597 = vmatprep.subr.mxu0 0.0
    %598 = vmatpush1.msra.mxu0 0.0
    %599 = vmatprep.subr.mxu0 0.0
    %600 = vmatpush1.msra.mxu0 0.0
    %601 = vmatprep.subr.mxu0 0.0
    %602 = vmatpush1.msra.mxu0 0.0
    %603 = vmatprep.subr.mxu0 0.0
    %604 = vmatpush1.msra.mxu0 0.0
    %605 = vmatprep.subr.mxu0 0.0
    %606 = vmatpush1.msra.mxu0 0.0
    %607 = vmatprep.subr.mxu0 0.0
    %608 = vmatpush1.msra.mxu0 0.0
    %609 = vmatprep.subr.mxu0 0.0
    %610 = vmatpush1.msra.mxu0 0.0
    %611 = vmatprep.subr.mxu0 0.0
    %612 = vmatpush1.msra.mxu0 0.0
    %613 = vmatprep.subr.mxu0 0.0
    %614 = vmatpush1.msra.mxu0 0.0
    %615 = vmatprep.subr.mxu0 0.0
    %616 = vmatpush1.msra.mxu0 0.0
    %617 = vmatprep.subr.mxu0 0.0
    %618 = vmatpush1.msra.mxu0 0.0
    %619 = vmatprep.mubr.f32.mxu0 0.0
    %620 = vmatmul.mubr.f32.gmra.mrb[0].mxu0 %v553
    %v621 = vpop.f32.mrb[0].mxu0
    %v622 = vadd.f32 %v448, %v621
    %v623 = vpop.f32.mrb[0].mxu0
    %624 = vdwg.mxu0
    %v625 = vxor.u32 %v622, 2147483648
    %v626 = vmul.f32 %v625, 1.442695
    %v627 = vpow.pop %v626
    %v628 = vadd.f32 %v627, 1.0
    %v629 = vrcp.pop %v628
    %v630 = vmul.f32 1.0, %v629
    %v631 = vtanh.pop %v622
    %v632 = vmul.f32 %v630, 0.0
    %634 = vrot.lane.b32.xlu0 %v631, 64
    %v635 = vpop.permute.xlu0 %634
    %v637 = vmul.f32 %v630, %v635
    %639 = vrot.lane.b32.xlu0 %v637, 32
    %v640 = vpop.permute.xlu0 %639
    %v642 = vadd.f32 %v632, %v640
    %v643 = vtanh.pop %v642
    %645 = vrot.lane.b32.xlu0 %v643, 64
    %v646 = vpop.permute.xlu0 %645
    %v648 = vmul.f32 %v630, %v646
    %v649 = vsel %vm354, %v549, 0
    %651 = vmatprep.subr.mxu0 0.0
    %652 = vmatpush1.msra.mxu0 %v432
    %653 = vmatprep.subr.mxu0 0.0
    %654 = vmatpush1.msra.mxu0 %v433
    %655 = vmatprep.subr.mxu0 0.0
    %656 = vmatpush1.msra.mxu0 %v434
    %657 = vmatprep.subr.mxu0 0.0
    %658 = vmatpush1.msra.mxu0 %v435
    %659 = vmatprep.subr.mxu0 0.0
    %660 = vmatpush1.msra.mxu0 0.0
    %661 = vmatprep.subr.mxu0 0.0
    %662 = vmatpush1.msra.mxu0 0.0
    %663 = vmatprep.subr.mxu0 0.0
    %664 = vmatpush1.msra.mxu0 0.0
    %665 = vmatprep.subr.mxu0 0.0
    %666 = vmatpush1.msra.mxu0 0.0
    %667 = vmatprep.subr.mxu0 0.0
    %668 = vmatpush1.msra.mxu0 0.0
    %669 = vmatprep.subr.mxu0 0.0
    %670 = vmatpush1.msra.mxu0 0.0
    %671 = vmatprep.subr.mxu0 0.0
    %672 = vmatpush1.msra.mxu0 0.0
    %673 = vmatprep.subr.mxu0 0.0
    %674 = vmatpush1.msra.mxu0 0.0
    %675 = vmatprep.subr.mxu0 0.0
    %676 = vmatpush1.msra.mxu0 0.0
    %677 = vmatprep.subr.mxu0 0.0
    %678 = vmatpush1.msra.mxu0 0.0
    %679 = vmatprep.subr.mxu0 0.0
    %680 = vmatpush1.msra.mxu0 0.0
    %681 = vmatprep.subr.mxu0 0.0
    %682 = vmatpush1.msra.mxu0 0.0
    %683 = vmatprep.subr.mxu0 0.0
    %684 = vmatpush1.msra.mxu0 0.0
    %685 = vmatprep.subr.mxu0 0.0
    %686 = vmatpush1.msra.mxu0 0.0
    %687 = vmatprep.subr.mxu0 0.0
    %688 = vmatpush1.msra.mxu0 0.0
    %689 = vmatprep.subr.mxu0 0.0
    %690 = vmatpush1.msra.mxu0 0.0
    %691 = vmatprep.subr.mxu0 0.0
    %692 = vmatpush1.msra.mxu0 0.0
    %693 = vmatprep.subr.mxu0 0.0
    %694 = vmatpush1.msra.mxu0 0.0
    %695 = vmatprep.subr.mxu0 0.0
    %696 = vmatpush1.msra.mxu0 0.0
    %697 = vmatprep.subr.mxu0 0.0
    %698 = vmatpush1.msra.mxu0 0.0
    %699 = vmatprep.subr.mxu0 0.0
    %700 = vmatpush1.msra.mxu0 0.0
    %701 = vmatprep.subr.mxu0 0.0
    %702 = vmatpush1.msra.mxu0 0.0
    %703 = vmatprep.subr.mxu0 0.0
    %704 = vmatpush1.msra.mxu0 0.0
    %705 = vmatprep.subr.mxu0 0.0
    %706 = vmatpush1.msra.mxu0 0.0
    %707 = vmatprep.subr.mxu0 0.0
    %708 = vmatpush1.msra.mxu0 0.0
    %709 = vmatprep.subr.mxu0 0.0
    %710 = vmatpush1.msra.mxu0 0.0
    %711 = vmatprep.subr.mxu0 0.0
    %712 = vmatpush1.msra.mxu0 0.0
    %713 = vmatprep.subr.mxu0 0.0
    %714 = vmatpush1.msra.mxu0 0.0
    %715 = vmatprep.mubr.f32.mxu0 0.0
    %716 = vmatmul.mubr.f32.gmra.mrb[0].mxu0 %v649
    %v717 = vpop.f32.mrb[0].mxu0
    %v718 = vadd.f32 0.0, %v717
    %v719 = vpop.f32.mrb[0].mxu0
    %720 = vdwg.mxu0
    %v721 = vadd.f32 %v405, %v718
    %v722 = vxor.u32 %v721, 2147483648
    %v723 = vmul.f32 %v722, 1.442695
    %v724 = vpow.pop %v723
    %v725 = vadd.f32 %v724, 1.0
    %v726 = vrcp.pop %v725
    %v727 = vmul.f32 1.0, %v726
    %v728 = vtanh.pop %v721
    %v729 = vmul.f32 %v727, %v540
    %731 = vrot.lane.b32.xlu0 %v728, 64
    %v732 = vpop.permute.xlu0 %731
    %v734 = vmul.f32 %v727, %v732
    %736 = vrot.lane.b32.xlu0 %v734, 32
    %v737 = vpop.permute.xlu0 %736
    %v739 = vadd.f32 %v729, %v737
    %v740 = vtanh.pop %v739
    %742 = vrot.lane.b32.xlu0 %v740, 64
    %v743 = vpop.permute.xlu0 %742
    %v745 = vmul.f32 %v727, %v743
    %747 = vrot.lane.b32.xlu0 %v745, 32
    %v748 = vpop.permute.xlu0 %747
    %751 = vrot.lane.b32.xlu0 %v648, 64
    %v752 = vpop.permute.xlu0 %751
    %v754 = vsel %vm354, %v748, %v752
    %v756 = vsel %vm217, %v754, 0
    %758 = vmatprep.subr.mxu0 0.0
    %759 = vmatpush1.msra.mxu0 %v436
    %760 = vmatprep.subr.mxu0 0.0
    %761 = vmatpush1.msra.mxu0 %v437
    %762 = vmatprep.subr.mxu0 0.0
    %763 = vmatpush1.msra.mxu0 %v438
    %764 = vmatprep.subr.mxu0 0.0
    %765 = vmatpush1.msra.mxu0 %v439
    %766 = vmatprep.subr.mxu0 0.0
    %767 = vmatpush1.msra.mxu0 %v440
    %768 = vmatprep.subr.mxu0 0.0
    %769 = vmatpush1.msra.mxu0 %v441
    %770 = vmatprep.subr.mxu0 0.0
    %771 = vmatpush1.msra.mxu0 %v442
    %772 = vmatprep.subr.mxu0 0.0
    %773 = vmatpush1.msra.mxu0 %v443
    %774 = vmatprep.subr.mxu0 0.0
    %775 = vmatpush1.msra.mxu0 0.0
    %776 = vmatprep.subr.mxu0 0.0
    %777 = vmatpush1.msra.mxu0 0.0
    %778 = vmatprep.subr.mxu0 0.0
    %779 = vmatpush1.msra.mxu0 0.0
    %780 = vmatprep.subr.mxu0 0.0
    %781 = vmatpush1.msra.mxu0 0.0
    %782 = vmatprep.subr.mxu0 0.0
    %783 = vmatpush1.msra.mxu0 0.0
    %784 = vmatprep.subr.mxu0 0.0
    %785 = vmatpush1.msra.mxu0 0.0
    %786 = vmatprep.subr.mxu0 0.0
    %787 = vmatpush1.msra.mxu0 0.0
    %788 = vmatprep.subr.mxu0 0.0
    %789 = vmatpush1.msra.mxu0 0.0
    %790 = vmatprep.subr.mxu0 0.0
    %791 = vmatpush1.msra.mxu0 0.0
    %792 = vmatprep.subr.mxu0 0.0
    %793 = vmatpush1.msra.mxu0 0.0
    %794 = vmatprep.subr.mxu0 0.0
    %795 = vmatpush1.msra.mxu0 0.0
    %796 = vmatprep.subr.mxu0 0.0
    %797 = vmatpush1.msra.mxu0 0.0
    %798 = vmatprep.subr.mxu0 0.0
    %799 = vmatpush1.msra.mxu0 0.0
    %800 = vmatprep.subr.mxu0 0.0
    %801 = vmatpush1.msra.mxu0 0.0
    %802 = vmatprep.subr.mxu0 0.0
    %803 = vmatpush1.msra.mxu0 0.0
    %804 = vmatprep.subr.mxu0 0.0
    %805 = vmatpush1.msra.mxu0 0.0
    %806 = vmatprep.subr.mxu0 0.0
    %807 = vmatpush1.msra.mxu0 0.0
    %808 = vmatprep.subr.mxu0 0.0
    %809 = vmatpush1.msra.mxu0 0.0
    %810 = vmatprep.subr.mxu0 0.0
    %811 = vmatpush1.msra.mxu0 0.0
    %812 = vmatprep.subr.mxu0 0.0
    %813 = vmatpush1.msra.mxu0 0.0
    %814 = vmatprep.subr.mxu0 0.0
    %815 = vmatpush1.msra.mxu0 0.0
    %816 = vmatprep.subr.mxu0 0.0
    %817 = vmatpush1.msra.mxu0 0.0
    %818 = vmatprep.subr.mxu0 0.0
    %819 = vmatpush1.msra.mxu0 0.0
    %820 = vmatprep.subr.mxu0 0.0
    %821 = vmatpush1.msra.mxu0 0.0
    %822 = vmatprep.mubr.f32.mxu0 0.0
    %823 = vmatmul.mubr.f32.gmra.mrb[0].mxu0 %v756
    %v824 = vpop.f32.mrb[0].mxu0
    %v825 = vadd.f32 %v448, %v824
    %v826 = vpop.f32.mrb[0].mxu0
    %827 = vdwg.mxu0
    %v828 = vxor.u32 %v825, 2147483648
    %v829 = vmul.f32 %v828, 1.442695
    %v830 = vpow.pop %v829
    %v831 = vadd.f32 %v830, 1.0
    %v832 = vrcp.pop %v831
    %v833 = vmul.f32 1.0, %v832
    %v834 = vtanh.pop %v825
    %v835 = vmul.f32 %v833, %v642
    %837 = vrot.lane.b32.xlu0 %v834, 64
    %v838 = vpop.permute.xlu0 %837
    %v840 = vmul.f32 %v833, %v838
    %842 = vrot.lane.b32.xlu0 %v840, 32
    %v843 = vpop.permute.xlu0 %842
    %v845 = vadd.f32 %v835, %v843
    %v846 = vtanh.pop %v845
    %848 = vrot.lane.b32.xlu0 %v846, 64
    %v849 = vpop.permute.xlu0 %848
    %v851 = vmul.f32 %v833, %v849
    %v852 = vsel %vm354, %v748, 0
    %854 = vmatprep.subr.mxu0 0.0
    %855 = vmatpush1.msra.mxu0 %v432
    %856 = vmatprep.subr.mxu0 0.0
    %857 = vmatpush1.msra.mxu0 %v433
    %858 = vmatprep.subr.mxu0 0.0
    %859 = vmatpush1.msra.mxu0 %v434
    %860 = vmatprep.subr.mxu0 0.0
    %861 = vmatpush1.msra.mxu0 %v435
    %862 = vmatprep.subr.mxu0 0.0
    %863 = vmatpush1.msra.mxu0 0.0
    %864 = vmatprep.subr.mxu0 0.0
    %865 = vmatpush1.msra.mxu0 0.0
    %866 = vmatprep.subr.mxu0 0.0
    %867 = vmatpush1.msra.mxu0 0.0
    %868 = vmatprep.subr.mxu0 0.0
    %869 = vmatpush1.msra.mxu0 0.0
    %870 = vmatprep.subr.mxu0 0.0
    %871 = vmatpush1.msra.mxu0 0.0
    %872 = vmatprep.subr.mxu0 0.0
    %873 = vmatpush1.msra.mxu0 0.0
    %874 = vmatprep.subr.mxu0 0.0
    %875 = vmatpush1.msra.mxu0 0.0
    %876 = vmatprep.subr.mxu0 0.0
    %877 = vmatpush1.msra.mxu0 0.0
    %878 = vmatprep.subr.mxu0 0.0
    %879 = vmatpush1.msra.mxu0 0.0
    %880 = vmatprep.subr.mxu0 0.0
    %881 = vmatpush1.msra.mxu0 0.0
    %882 = vmatprep.subr.mxu0 0.0
    %883 = vmatpush1.msra.mxu0 0.0
    %884 = vmatprep.subr.mxu0 0.0
    %885 = vmatpush1.msra.mxu0 0.0
    %886 = vmatprep.subr.mxu0 0.0
    %887 = vmatpush1.msra.mxu0 0.0
    %888 = vmatprep.subr.mxu0 0.0
    %889 = vmatpush1.msra.mxu0 0.0
    %890 = vmatprep.subr.mxu0 0.0
    %891 = vmatpush1.msra.mxu0 0.0
    %892 = vmatprep.subr.mxu0 0.0
    %893 = vmatpush1.msra.mxu0 0.0
    %894 = vmatprep.subr.mxu0 0.0
    %895 = vmatpush1.msra.mxu0 0.0
    %896 = vmatprep.subr.mxu0 0.0
    %897 = vmatpush1.msra.mxu0 0.0
    %898 = vmatprep.subr.mxu0 0.0
    %899 = vmatpush1.msra.mxu0 0.0
    %900 = vmatprep.subr.mxu0 0.0
    %901 = vmatpush1.msra.mxu0 0.0
    %902 = vmatprep.subr.mxu0 0.0
    %903 = vmatpush1.msra.mxu0 0.0
    %904 = vmatprep.subr.mxu0 0.0
    %905 = vmatpush1.msra.mxu0 0.0
    %906 = vmatprep.subr.mxu0 0.0
    %907 = vmatpush1.msra.mxu0 0.0
    %908 = vmatprep.subr.mxu0 0.0
    %909 = vmatpush1.msra.mxu0 0.0
    %910 = vmatprep.subr.mxu0 0.0
    %911 = vmatpush1.msra.mxu0 0.0
    %912 = vmatprep.subr.mxu0 0.0
    %913 = vmatpush1.msra.mxu0 0.0
    %914 = vmatprep.subr.mxu0 0.0
    %915 = vmatpush1.msra.mxu0 0.0
    %916 = vmatprep.subr.mxu0 0.0
    %917 = vmatpush1.msra.mxu0 0.0
    %918 = vmatprep.mubr.f32.mxu0 0.0
    %919 = vmatmul.mubr.f32.gmra.mrb[0].mxu0 %v852
    %v920 = vpop.f32.mrb[0].mxu0
    %v921 = vadd.f32 0.0, %v920
    %v922 = vpop.f32.mrb[0].mxu0
    %923 = vdwg.mxu0
    %v924 = vadd.f32 %v410, %v921
    %v925 = vxor.u32 %v924, 2147483648
    %v926 = vmul.f32 %v925, 1.442695
    %v927 = vpow.pop %v926
    %v928 = vadd.f32 %v927, 1.0
    %v929 = vrcp.pop %v928
    %v930 = vmul.f32 1.0, %v929
    %v931 = vtanh.pop %v924
    %v932 = vmul.f32 %v930, %v739
    %934 = vrot.lane.b32.xlu0 %v931, 64
    %v935 = vpop.permute.xlu0 %934
    %v937 = vmul.f32 %v930, %v935
    %939 = vrot.lane.b32.xlu0 %v937, 32
    %v940 = vpop.permute.xlu0 %939
    %v942 = vadd.f32 %v932, %v940
    %v943 = vtanh.pop %v942
    %945 = vrot.lane.b32.xlu0 %v943, 64
    %v946 = vpop.permute.xlu0 %945
    %v948 = vmul.f32 %v930, %v946
    %950 = vrot.lane.b32.xlu0 %v948, 32
    %v951 = vpop.permute.xlu0 %950
    %954 = vrot.lane.b32.xlu0 %v851, 64
    %v955 = vpop.permute.xlu0 %954
    %v957 = vsel %vm354, %v951, %v955
    %v959 = vsel %vm217, %v957, 0
    %961 = vmatprep.subr.mxu0 0.0
    %962 = vmatpush1.msra.mxu0 %v436
    %963 = vmatprep.subr.mxu0 0.0
    %964 = vmatpush1.msra.mxu0 %v437
    %965 = vmatprep.subr.mxu0 0.0
    %966 = vmatpush1.msra.mxu0 %v438
    %967 = vmatprep.subr.mxu0 0.0
    %968 = vmatpush1.msra.mxu0 %v439
    %969 = vmatprep.subr.mxu0 0.0
    %970 = vmatpush1.msra.mxu0 %v440
    %971 = vmatprep.subr.mxu0 0.0
    %972 = vmatpush1.msra.mxu0 %v441
    %973 = vmatprep.subr.mxu0 0.0
    %974 = vmatpush1.msra.mxu0 %v442
    %975 = vmatprep.subr.mxu0 0.0
    %976 = vmatpush1.msra.mxu0 %v443
    %977 = vmatprep.subr.mxu0 0.0
    %978 = vmatpush1.msra.mxu0 0.0
    %979 = vmatprep.subr.mxu0 0.0
    %980 = vmatpush1.msra.mxu0 0.0
    %981 = vmatprep.subr.mxu0 0.0
    %982 = vmatpush1.msra.mxu0 0.0
    %983 = vmatprep.subr.mxu0 0.0
    %984 = vmatpush1.msra.mxu0 0.0
    %985 = vmatprep.subr.mxu0 0.0
    %986 = vmatpush1.msra.mxu0 0.0
    %987 = vmatprep.subr.mxu0 0.0
    %988 = vmatpush1.msra.mxu0 0.0
    %989 = vmatprep.subr.mxu0 0.0
    %990 = vmatpush1.msra.mxu0 0.0
    %991 = vmatprep.subr.mxu0 0.0
    %992 = vmatpush1.msra.mxu0 0.0
    %993 = vmatprep.subr.mxu0 0.0
    %994 = vmatpush1.msra.mxu0 0.0
    %995 = vmatprep.subr.mxu0 0.0
    %996 = vmatpush1.msra.mxu0 0.0
    %997 = vmatprep.subr.mxu0 0.0
    %998 = vmatpush1.msra.mxu0 0.0
    %999 = vmatprep.subr.mxu0 0.0
    %1000 = vmatpush1.msra.mxu0 0.0
    %1001 = vmatprep.subr.mxu0 0.0
    %1002 = vmatpush1.msra.mxu0 0.0
    %1003 = vmatprep.subr.mxu0 0.0
    %1004 = vmatpush1.msra.mxu0 0.0
    %1005 = vmatprep.subr.mxu0 0.0
    %1006 = vmatpush1.msra.mxu0 0.0
    %1007 = vmatprep.subr.mxu0 0.0
    %1008 = vmatpush1.msra.mxu0 0.0
    %1009 = vmatprep.subr.mxu0 0.0
    %1010 = vmatpush1.msra.mxu0 0.0
    %1011 = vmatprep.subr.mxu0 0.0
    %1012 = vmatpush1.msra.mxu0 0.0
    %1013 = vmatprep.subr.mxu0 0.0
    %1014 = vmatpush1.msra.mxu0 0.0
    %1015 = vmatprep.subr.mxu0 0.0
    %1016 = vmatpush1.msra.mxu0 0.0
    %1017 = vmatprep.subr.mxu0 0.0
    %1018 = vmatpush1.msra.mxu0 0.0
    %1019 = vmatprep.subr.mxu0 0.0
    %1020 = vmatpush1.msra.mxu0 0.0
    %1021 = vmatprep.subr.mxu0 0.0
    %1022 = vmatpush1.msra.mxu0 0.0
    %1023 = vmatprep.subr.mxu0 0.0
    %1024 = vmatpush1.msra.mxu0 0.0
    %1025 = vmatprep.mubr.f32.mxu0 0.0
    %1026 = vmatmul.mubr.f32.gmra.mrb[0].mxu0 %v959
    %v1027 = vpop.f32.mrb[0].mxu0
    %v1028 = vadd.f32 %v448, %v1027
    %v1029 = vpop.f32.mrb[0].mxu0
    %1030 = vdwg.mxu0
    %v1031 = vxor.u32 %v1028, 2147483648
    %v1032 = vmul.f32 %v1031, 1.442695
    %v1033 = vpow.pop %v1032
    %v1034 = vadd.f32 %v1033, 1.0
    %v1035 = vrcp.pop %v1034
    %v1036 = vmul.f32 1.0, %v1035
    %v1037 = vtanh.pop %v1028
    %v1038 = vmul.f32 %v1036, %v845
    %1040 = vrot.lane.b32.xlu0 %v1037, 64
    %v1041 = vpop.permute.xlu0 %1040
    %v1043 = vmul.f32 %v1036, %v1041
    %1045 = vrot.lane.b32.xlu0 %v1043, 32
    %v1046 = vpop.permute.xlu0 %1045
    %v1048 = vadd.f32 %v1038, %v1046
    %v1049 = vtanh.pop %v1048
    %1051 = vrot.lane.b32.xlu0 %v1049, 64
    %v1052 = vpop.permute.xlu0 %1051
    %v1054 = vmul.f32 %v1036, %v1052
    %v1055 = vsel %vm354, %v951, 0
    %1057 = vmatprep.subr.mxu0 0.0
    %1058 = vmatpush1.msra.mxu0 %v432
    %1059 = vmatprep.subr.mxu0 0.0
    %1060 = vmatpush1.msra.mxu0 %v433
    %1061 = vmatprep.subr.mxu0 0.0
    %1062 = vmatpush1.msra.mxu0 %v434
    %1063 = vmatprep.subr.mxu0 0.0
    %1064 = vmatpush1.msra.mxu0 %v435
    %1065 = vmatprep.subr.mxu0 0.0
    %1066 = vmatpush1.msra.mxu0 0.0
    %1067 = vmatprep.subr.mxu0 0.0
    %1068 = vmatpush1.msra.mxu0 0.0
    %1069 = vmatprep.subr.mxu0 0.0
    %1070 = vmatpush1.msra.mxu0 0.0
    %1071 = vmatprep.subr.mxu0 0.0
    %1072 = vmatpush1.msra.mxu0 0.0
    %1073 = vmatprep.subr.mxu0 0.0
    %1074 = vmatpush1.msra.mxu0 0.0
    %1075 = vmatprep.subr.mxu0 0.0
    %1076 = vmatpush1.msra.mxu0 0.0
    %1077 = vmatprep.subr.mxu0 0.0
    %1078 = vmatpush1.msra.mxu0 0.0
    %1079 = vmatprep.subr.mxu0 0.0
    %1080 = vmatpush1.msra.mxu0 0.0
    %1081 = vmatprep.subr.mxu0 0.0
    %1082 = vmatpush1.msra.mxu0 0.0
    %1083 = vmatprep.subr.mxu0 0.0
    %1084 = vmatpush1.msra.mxu0 0.0
    %1085 = vmatprep.subr.mxu0 0.0
    %1086 = vmatpush1.msra.mxu0 0.0
    %1087 = vmatprep.subr.mxu0 0.0
    %1088 = vmatpush1.msra.mxu0 0.0
    %1089 = vmatprep.subr.mxu0 0.0
    %1090 = vmatpush1.msra.mxu0 0.0
    %1091 = vmatprep.subr.mxu0 0.0
    %1092 = vmatpush1.msra.mxu0 0.0
    %1093 = vmatprep.subr.mxu0 0.0
    %1094 = vmatpush1.msra.mxu0 0.0
    %1095 = vmatprep.subr.mxu0 0.0
    %1096 = vmatpush1.msra.mxu0 0.0
    %1097 = vmatprep.subr.mxu0 0.0
    %1098 = vmatpush1.msra.mxu0 0.0
    %1099 = vmatprep.subr.mxu0 0.0
    %1100 = vmatpush1.msra.mxu0 0.0
    %1101 = vmatprep.subr.mxu0 0.0
    %1102 = vmatpush1.msra.mxu0 0.0
    %1103 = vmatprep.subr.mxu0 0.0
    %1104 = vmatpush1.msra.mxu0 0.0
    %1105 = vmatprep.subr.mxu0 0.0
    %1106 = vmatpush1.msra.mxu0 0.0
    %1107 = vmatprep.subr.mxu0 0.0
    %1108 = vmatpush1.msra.mxu0 0.0
    %1109 = vmatprep.subr.mxu0 0.0
    %1110 = vmatpush1.msra.mxu0 0.0
    %1111 = vmatprep.subr.mxu0 0.0
    %1112 = vmatpush1.msra.mxu0 0.0
    %1113 = vmatprep.subr.mxu0 0.0
    %1114 = vmatpush1.msra.mxu0 0.0
    %1115 = vmatprep.subr.mxu0 0.0
    %1116 = vmatpush1.msra.mxu0 0.0
    %1117 = vmatprep.subr.mxu0 0.0
    %1118 = vmatpush1.msra.mxu0 0.0
    %1119 = vmatprep.subr.mxu0 0.0
    %1120 = vmatpush1.msra.mxu0 0.0
    %1121 = vmatprep.mubr.f32.mxu0 0.0
    %1122 = vmatmul.mubr.f32.gmra.mrb[0].mxu0 %v1055
    %v1123 = vpop.f32.mrb[0].mxu0
    %v1124 = vadd.f32 0.0, %v1123
    %v1125 = vpop.f32.mrb[0].mxu0
    %1126 = vdwg.mxu0
    %v1127 = vadd.f32 %v413, %v1124
    %v1128 = vxor.u32 %v1127, 2147483648
    %v1129 = vmul.f32 %v1128, 1.442695
    %v1130 = vpow.pop %v1129
    %v1131 = vadd.f32 %v1130, 1.0
    %v1132 = vrcp.pop %v1131
    %v1133 = vmul.f32 1.0, %v1132
    %v1134 = vtanh.pop %v1127
    %v1135 = vmul.f32 %v1133, %v942
    %1137 = vrot.lane.b32.xlu0 %v1134, 64
    %v1138 = vpop.permute.xlu0 %1137
    %v1140 = vmul.f32 %v1133, %v1138
    %1142 = vrot.lane.b32.xlu0 %v1140, 32
    %v1143 = vpop.permute.xlu0 %1142
    %v1145 = vadd.f32 %v1135, %v1143
    %v1146 = vtanh.pop %v1145
    %1148 = vrot.lane.b32.xlu0 %v1146, 64
    %v1149 = vpop.permute.xlu0 %1148
    %v1151 = vmul.f32 %v1133, %v1149
    %1153 = vrot.lane.b32.xlu0 %v1151, 32
    %v1154 = vpop.permute.xlu0 %1153
    %1157 = vrot.lane.b32.xlu0 %v1054, 64
    %v1158 = vpop.permute.xlu0 %1157
    %v1160 = vsel %vm354, %v1154, %v1158
    %v1162 = vsel %vm217, %v1160, 0
    %1164 = vmatprep.subr.mxu0 0.0
    %1165 = vmatpush1.msra.mxu0 %v436
    %1166 = vmatprep.subr.mxu0 0.0
    %1167 = vmatpush1.msra.mxu0 %v437
    %1168 = vmatprep.subr.mxu0 0.0
    %1169 = vmatpush1.msra.mxu0 %v438
    %1170 = vmatprep.subr.mxu0 0.0
    %1171 = vmatpush1.msra.mxu0 %v439
    %1172 = vmatprep.subr.mxu0 0.0
    %1173 = vmatpush1.msra.mxu0 %v440
    %1174 = vmatprep.subr.mxu0 0.0
    %1175 = vmatpush1.msra.mxu0 %v441
    %1176 = vmatprep.subr.mxu0 0.0
    %1177 = vmatpush1.msra.mxu0 %v442
    %1178 = vmatprep.subr.mxu0 0.0
    %1179 = vmatpush1.msra.mxu0 %v443
    %1180 = vmatprep.subr.mxu0 0.0
    %1181 = vmatpush1.msra.mxu0 0.0
    %1182 = vmatprep.subr.mxu0 0.0
    %1183 = vmatpush1.msra.mxu0 0.0
    %1184 = vmatprep.subr.mxu0 0.0
    %1185 = vmatpush1.msra.mxu0 0.0
    %1186 = vmatprep.subr.mxu0 0.0
    %1187 = vmatpush1.msra.mxu0 0.0
    %1188 = vmatprep.subr.mxu0 0.0
    %1189 = vmatpush1.msra.mxu0 0.0
    %1190 = vmatprep.subr.mxu0 0.0
    %1191 = vmatpush1.msra.mxu0 0.0
    %1192 = vmatprep.subr.mxu0 0.0
    %1193 = vmatpush1.msra.mxu0 0.0
    %1194 = vmatprep.subr.mxu0 0.0
    %1195 = vmatpush1.msra.mxu0 0.0
    %1196 = vmatprep.subr.mxu0 0.0
    %1197 = vmatpush1.msra.mxu0 0.0
    %1198 = vmatprep.subr.mxu0 0.0
    %1199 = vmatpush1.msra.mxu0 0.0
    %1200 = vmatprep.subr.mxu0 0.0
    %1201 = vmatpush1.msra.mxu0 0.0
    %1202 = vmatprep.subr.mxu0 0.0
    %1203 = vmatpush1.msra.mxu0 0.0
    %1204 = vmatprep.subr.mxu0 0.0
    %1205 = vmatpush1.msra.mxu0 0.0
    %1206 = vmatprep.subr.mxu0 0.0
    %1207 = vmatpush1.msra.mxu0 0.0
    %1208 = vmatprep.subr.mxu0 0.0
    %1209 = vmatpush1.msra.mxu0 0.0
    %1210 = vmatprep.subr.mxu0 0.0
    %1211 = vmatpush1.msra.mxu0 0.0
    %1212 = vmatprep.subr.mxu0 0.0
    %1213 = vmatpush1.msra.mxu0 0.0
    %1214 = vmatprep.subr.mxu0 0.0
    %1215 = vmatpush1.msra.mxu0 0.0
    %1216 = vmatprep.subr.mxu0 0.0
    %1217 = vmatpush1.msra.mxu0 0.0
    %1218 = vmatprep.subr.mxu0 0.0
    %1219 = vmatpush1.msra.mxu0 0.0
    %1220 = vmatprep.subr.mxu0 0.0
    %1221 = vmatpush1.msra.mxu0 0.0
    %1222 = vmatprep.subr.mxu0 0.0
    %1223 = vmatpush1.msra.mxu0 0.0
    %1224 = vmatprep.subr.mxu0 0.0
    %1225 = vmatpush1.msra.mxu0 0.0
    %1226 = vmatprep.subr.mxu0 0.0
    %1227 = vmatpush1.msra.mxu0 0.0
    %1228 = vmatprep.mubr.f32.mxu0 0.0
    %1229 = vmatmul.mubr.f32.gmra.mrb[0].mxu0 %v1162
    %v1230 = vpop.f32.mrb[0].mxu0
    %v1231 = vadd.f32 %v448, %v1230
    %v1232 = vpop.f32.mrb[0].mxu0
    %1233 = vdwg.mxu0
    %v1234 = vxor.u32 %v1231, 2147483648
    %v1235 = vmul.f32 %v1234, 1.442695
    %v1236 = vpow.pop %v1235
    %v1237 = vadd.f32 %v1236, 1.0
    %v1238 = vrcp.pop %v1237
    %v1239 = vmul.f32 1.0, %v1238
    %v1240 = vtanh.pop %v1231
    %v1241 = vmul.f32 %v1239, %v1048
    %1243 = vrot.lane.b32.xlu0 %v1240, 64
    %v1244 = vpop.permute.xlu0 %1243
    %v1246 = vmul.f32 %v1239, %v1244
    %1248 = vrot.lane.b32.xlu0 %v1246, 32
    %v1249 = vpop.permute.xlu0 %1248
    %v1251 = vadd.f32 %v1241, %v1249
    %v1252 = vtanh.pop %v1251
    %1254 = vrot.lane.b32.xlu0 %v1252, 64
    %v1255 = vpop.permute.xlu0 %1254
    %v1257 = vmul.f32 %v1239, %v1255
    %v1258 = vsel %vm354, %v1154, 0
    %1260 = vmatprep.subr.mxu0 0.0
    %1261 = vmatpush1.msra.mxu0 %v432
    %1262 = vmatprep.subr.mxu0 0.0
    %1263 = vmatpush1.msra.mxu0 %v433
    %1264 = vmatprep.subr.mxu0 0.0
    %1265 = vmatpush1.msra.mxu0 %v434
    %1266 = vmatprep.subr.mxu0 0.0
    %1267 = vmatpush1.msra.mxu0 %v435
    %1268 = vmatprep.subr.mxu0 0.0
    %1269 = vmatpush1.msra.mxu0 0.0
    %1270 = vmatprep.subr.mxu0 0.0
    %1271 = vmatpush1.msra.mxu0 0.0
    %1272 = vmatprep.subr.mxu0 0.0
    %1273 = vmatpush1.msra.mxu0 0.0
    %1274 = vmatprep.subr.mxu0 0.0
    %1275 = vmatpush1.msra.mxu0 0.0
    %1276 = vmatprep.subr.mxu0 0.0
    %1277 = vmatpush1.msra.mxu0 0.0
    %1278 = vmatprep.subr.mxu0 0.0
    %1279 = vmatpush1.msra.mxu0 0.0
    %1280 = vmatprep.subr.mxu0 0.0
    %1281 = vmatpush1.msra.mxu0 0.0
    %1282 = vmatprep.subr.mxu0 0.0
    %1283 = vmatpush1.msra.mxu0 0.0
    %1284 = vmatprep.subr.mxu0 0.0
    %1285 = vmatpush1.msra.mxu0 0.0
    %1286 = vmatprep.subr.mxu0 0.0
    %1287 = vmatpush1.msra.mxu0 0.0
    %1288 = vmatprep.subr.mxu0 0.0
    %1289 = vmatpush1.msra.mxu0 0.0
    %1290 = vmatprep.subr.mxu0 0.0
    %1291 = vmatpush1.msra.mxu0 0.0
    %1292 = vmatprep.subr.mxu0 0.0
    %1293 = vmatpush1.msra.mxu0 0.0
    %1294 = vmatprep.subr.mxu0 0.0
    %1295 = vmatpush1.msra.mxu0 0.0
    %1296 = vmatprep.subr.mxu0 0.0
    %1297 = vmatpush1.msra.mxu0 0.0
    %1298 = vmatprep.subr.mxu0 0.0
    %1299 = vmatpush1.msra.mxu0 0.0
    %1300 = vmatprep.subr.mxu0 0.0
    %1301 = vmatpush1.msra.mxu0 0.0
    %1302 = vmatprep.subr.mxu0 0.0
    %1303 = vmatpush1.msra.mxu0 0.0
    %1304 = vmatprep.subr.mxu0 0.0
    %1305 = vmatpush1.msra.mxu0 0.0
    %1306 = vmatprep.subr.mxu0 0.0
    %1307 = vmatpush1.msra.mxu0 0.0
    %1308 = vmatprep.subr.mxu0 0.0
    %1309 = vmatpush1.msra.mxu0 0.0
    %1310 = vmatprep.subr.mxu0 0.0
    %1311 = vmatpush1.msra.mxu0 0.0
    %1312 = vmatprep.subr.mxu0 0.0
    %1313 = vmatpush1.msra.mxu0 0.0
    %1314 = vmatprep.subr.mxu0 0.0
    %1315 = vmatpush1.msra.mxu0 0.0
    %1316 = vmatprep.subr.mxu0 0.0
    %1317 = vmatpush1.msra.mxu0 0.0
    %1318 = vmatprep.subr.mxu0 0.0
    %1319 = vmatpush1.msra.mxu0 0.0
    %1320 = vmatprep.subr.mxu0 0.0
    %1321 = vmatpush1.msra.mxu0 0.0
    %1322 = vmatprep.subr.mxu0 0.0
    %1323 = vmatpush1.msra.mxu0 0.0
    %1324 = vmatprep.mubr.f32.mxu0 0.0
    %1325 = vmatmul.mubr.f32.gmra.mrb[0].mxu0 %v1258
    %v1326 = vpop.f32.mrb[0].mxu0
    %v1327 = vadd.f32 0.0, %v1326
    %v1328 = vpop.f32.mrb[0].mxu0
    %1329 = vdwg.mxu0
    %v1330 = vadd.f32 %v418, %v1327
    %v1331 = vxor.u32 %v1330, 2147483648
    %v1332 = vmul.f32 %v1331, 1.442695
    %v1333 = vpow.pop %v1332
    %v1334 = vadd.f32 %v1333, 1.0
    %v1335 = vrcp.pop %v1334
    %v1336 = vmul.f32 1.0, %v1335
    %v1337 = vtanh.pop %v1330
    %v1338 = vmul.f32 %v1336, %v1145
    %1340 = vrot.lane.b32.xlu0 %v1337, 64
    %v1341 = vpop.permute.xlu0 %1340
    %v1343 = vmul.f32 %v1336, %v1341
    %1345 = vrot.lane.b32.xlu0 %v1343, 32
    %v1346 = vpop.permute.xlu0 %1345
    %v1348 = vadd.f32 %v1338, %v1346
    %v1349 = vtanh.pop %v1348
    %1351 = vrot.lane.b32.xlu0 %v1349, 64
    %v1352 = vpop.permute.xlu0 %1351
    %v1354 = vmul.f32 %v1336, %v1352
    %1356 = vrot.lane.b32.xlu0 %v1354, 32
    %v1357 = vpop.permute.xlu0 %1356
    %1360 = vrot.lane.b32.xlu0 %v1257, 64
    %v1361 = vpop.permute.xlu0 %1360
    %v1363 = vsel %vm354, %v1357, %v1361
    %v1365 = vsel %vm217, %v1363, 0
    %1367 = vmatprep.subr.mxu0 0.0
    %1368 = vmatpush1.msra.mxu0 %v436
    %1369 = vmatprep.subr.mxu0 0.0
    %1370 = vmatpush1.msra.mxu0 %v437
    %1371 = vmatprep.subr.mxu0 0.0
    %1372 = vmatpush1.msra.mxu0 %v438
    %1373 = vmatprep.subr.mxu0 0.0
    %1374 = vmatpush1.msra.mxu0 %v439
    %1375 = vmatprep.subr.mxu0 0.0
    %1376 = vmatpush1.msra.mxu0 %v440
    %1377 = vmatprep.subr.mxu0 0.0
    %1378 = vmatpush1.msra.mxu0 %v441
    %1379 = vmatprep.subr.mxu0 0.0
    %1380 = vmatpush1.msra.mxu0 %v442
    %1381 = vmatprep.subr.mxu0 0.0
    %1382 = vmatpush1.msra.mxu0 %v443
    %1383 = vmatprep.subr.mxu0 0.0
    %1384 = vmatpush1.msra.mxu0 0.0
    %1385 = vmatprep.subr.mxu0 0.0
    %1386 = vmatpush1.msra.mxu0 0.0
    %1387 = vmatprep.subr.mxu0 0.0
    %1388 = vmatpush1.msra.mxu0 0.0
    %1389 = vmatprep.subr.mxu0 0.0
    %1390 = vmatpush1.msra.mxu0 0.0
    %1391 = vmatprep.subr.mxu0 0.0
    %1392 = vmatpush1.msra.mxu0 0.0
    %1393 = vmatprep.subr.mxu0 0.0
    %1394 = vmatpush1.msra.mxu0 0.0
    %1395 = vmatprep.subr.mxu0 0.0
    %1396 = vmatpush1.msra.mxu0 0.0
    %1397 = vmatprep.subr.mxu0 0.0
    %1398 = vmatpush1.msra.mxu0 0.0
    %1399 = vmatprep.subr.mxu0 0.0
    %1400 = vmatpush1.msra.mxu0 0.0
    %1401 = vmatprep.subr.mxu0 0.0
    %1402 = vmatpush1.msra.mxu0 0.0
    %1403 = vmatprep.subr.mxu0 0.0
    %1404 = vmatpush1.msra.mxu0 0.0
    %1405 = vmatprep.subr.mxu0 0.0
    %1406 = vmatpush1.msra.mxu0 0.0
    %1407 = vmatprep.subr.mxu0 0.0
    %1408 = vmatpush1.msra.mxu0 0.0
    %1409 = vmatprep.subr.mxu0 0.0
    %1410 = vmatpush1.msra.mxu0 0.0
    %1411 = vmatprep.subr.mxu0 0.0
    %1412 = vmatpush1.msra.mxu0 0.0
    %1413 = vmatprep.subr.mxu0 0.0
    %1414 = vmatpush1.msra.mxu0 0.0
    %1415 = vmatprep.subr.mxu0 0.0
    %1416 = vmatpush1.msra.mxu0 0.0
    %1417 = vmatprep.subr.mxu0 0.0
    %1418 = vmatpush1.msra.mxu0 0.0
    %1419 = vmatprep.subr.mxu0 0.0
    %1420 = vmatpush1.msra.mxu0 0.0
    %1421 = vmatprep.subr.mxu0 0.0
    %1422 = vmatpush1.msra.mxu0 0.0
    %1423 = vmatprep.subr.mxu0 0.0
    %1424 = vmatpush1.msra.mxu0 0.0
    %1425 = vmatprep.subr.mxu0 0.0
    %1426 = vmatpush1.msra.mxu0 0.0
    %1427 = vmatprep.subr.mxu0 0.0
    %1428 = vmatpush1.msra.mxu0 0.0
    %1429 = vmatprep.subr.mxu0 0.0
    %1430 = vmatpush1.msra.mxu0 0.0
    %1431 = vmatprep.mubr.f32.mxu0 0.0
    %1432 = vmatmul.mubr.f32.gmra.mrb[0].mxu0 %v1365
    %v1433 = vpop.f32.mrb[0].mxu0
    %v1434 = vadd.f32 %v448, %v1433
    %v1435 = vpop.f32.mrb[0].mxu0
    %1436 = vdwg.mxu0
    %v1437 = vxor.u32 %v1434, 2147483648
    %v1438 = vmul.f32 %v1437, 1.442695
    %v1439 = vpow.pop %v1438
    %v1440 = vadd.f32 %v1439, 1.0
    %v1441 = vrcp.pop %v1440
    %v1442 = vmul.f32 1.0, %v1441
    %v1443 = vtanh.pop %v1434
    %v1444 = vmul.f32 %v1442, %v1251
    %1446 = vrot.lane.b32.xlu0 %v1443, 64
    %v1447 = vpop.permute.xlu0 %1446
    %v1449 = vmul.f32 %v1442, %v1447
    %1451 = vrot.lane.b32.xlu0 %v1449, 32
    %v1452 = vpop.permute.xlu0 %1451
    %v1454 = vadd.f32 %v1444, %v1452
    %v1455 = vtanh.pop %v1454
    %1457 = vrot.lane.b32.xlu0 %v1455, 64
    %v1458 = vpop.permute.xlu0 %1457
    %v1460 = vmul.f32 %v1442, %v1458
    %v1461 = vsel %vm354, %v1357, 0
    %1463 = vmatprep.subr.mxu0 0.0
    %1464 = vmatpush1.msra.mxu0 %v432
    %1465 = vmatprep.subr.mxu0 0.0
    %1466 = vmatpush1.msra.mxu0 %v433
    %1467 = vmatprep.subr.mxu0 0.0
    %1468 = vmatpush1.msra.mxu0 %v434
    %1469 = vmatprep.subr.mxu0 0.0
    %1470 = vmatpush1.msra.mxu0 %v435
    %1471 = vmatprep.subr.mxu0 0.0
    %1472 = vmatpush1.msra.mxu0 0.0
    %1473 = vmatprep.subr.mxu0 0.0
    %1474 = vmatpush1.msra.mxu0 0.0
    %1475 = vmatprep.subr.mxu0 0.0
    %1476 = vmatpush1.msra.mxu0 0.0
    %1477 = vmatprep.subr.mxu0 0.0
    %1478 = vmatpush1.msra.mxu0 0.0
    %1479 = vmatprep.subr.mxu0 0.0
    %1480 = vmatpush1.msra.mxu0 0.0
    %1481 = vmatprep.subr.mxu0 0.0
    %1482 = vmatpush1.msra.mxu0 0.0
    %1483 = vmatprep.subr.mxu0 0.0
    %1484 = vmatpush1.msra.mxu0 0.0
    %1485 = vmatprep.subr.mxu0 0.0
    %1486 = vmatpush1.msra.mxu0 0.0
    %1487 = vmatprep.subr.mxu0 0.0
    %1488 = vmatpush1.msra.mxu0 0.0
    %1489 = vmatprep.subr.mxu0 0.0
    %1490 = vmatpush1.msra.mxu0 0.0
    %1491 = vmatprep.subr.mxu0 0.0
    %1492 = vmatpush1.msra.mxu0 0.0
    %1493 = vmatprep.subr.mxu0 0.0
    %1494 = vmatpush1.msra.mxu0 0.0
    %1495 = vmatprep.subr.mxu0 0.0
    %1496 = vmatpush1.msra.mxu0 0.0
    %1497 = vmatprep.subr.mxu0 0.0
    %1498 = vmatpush1.msra.mxu0 0.0
    %1499 = vmatprep.subr.mxu0 0.0
    %1500 = vmatpush1.msra.mxu0 0.0
    %1501 = vmatprep.subr.mxu0 0.0
    %1502 = vmatpush1.msra.mxu0 0.0
    %1503 = vmatprep.subr.mxu0 0.0
    %1504 = vmatpush1.msra.mxu0 0.0
    %1505 = vmatprep.subr.mxu0 0.0
    %1506 = vmatpush1.msra.mxu0 0.0
    %1507 = vmatprep.subr.mxu0 0.0
    %1508 = vmatpush1.msra.mxu0 0.0
    %1509 = vmatprep.subr.mxu0 0.0
    %1510 = vmatpush1.msra.mxu0 0.0
    %1511 = vmatprep.subr.mxu0 0.0
    %1512 = vmatpush1.msra.mxu0 0.0
    %1513 = vmatprep.subr.mxu0 0.0
    %1514 = vmatpush1.msra.mxu0 0.0
    %1515 = vmatprep.subr.mxu0 0.0
    %1516 = vmatpush1.msra.mxu0 0.0
    %1517 = vmatprep.subr.mxu0 0.0
    %1518 = vmatpush1.msra.mxu0 0.0
    %1519 = vmatprep.subr.mxu0 0.0
    %1520 = vmatpush1.msra.mxu0 0.0
    %1521 = vmatprep.subr.mxu0 0.0
    %1522 = vmatpush1.msra.mxu0 0.0
    %1523 = vmatprep.subr.mxu0 0.0
    %1524 = vmatpush1.msra.mxu0 0.0
    %1525 = vmatprep.subr.mxu0 0.0
    %1526 = vmatpush1.msra.mxu0 0.0
    %1527 = vmatprep.mubr.f32.mxu0 0.0
    %1528 = vmatmul.mubr.f32.gmra.mrb[0].mxu0 %v1461
    %v1529 = vpop.f32.mrb[0].mxu0
    %v1530 = vadd.f32 0.0, %v1529
    %v1531 = vpop.f32.mrb[0].mxu0
    %1532 = vdwg.mxu0
    %v1533 = vadd.f32 %v421, %v1530
    %v1534 = vxor.u32 %v1533, 2147483648
    %v1535 = vmul.f32 %v1534, 1.442695
    %v1536 = vpow.pop %v1535
    %v1537 = vadd.f32 %v1536, 1.0
    %v1538 = vrcp.pop %v1537
    %v1539 = vmul.f32 1.0, %v1538
    %v1540 = vtanh.pop %v1533
    %v1541 = vmul.f32 %v1539, %v1348
    %1543 = vrot.lane.b32.xlu0 %v1540, 64
    %v1544 = vpop.permute.xlu0 %1543
    %v1546 = vmul.f32 %v1539, %v1544
    %1548 = vrot.lane.b32.xlu0 %v1546, 32
    %v1549 = vpop.permute.xlu0 %1548
    %v1551 = vadd.f32 %v1541, %v1549
    %v1552 = vtanh.pop %v1551
    %1554 = vrot.lane.b32.xlu0 %v1552, 64
    %v1555 = vpop.permute.xlu0 %1554
    %v1557 = vmul.f32 %v1539, %v1555
    %1559 = vrot.lane.b32.xlu0 %v1557, 32
    %v1560 = vpop.permute.xlu0 %1559
    %1563 = vrot.lane.b32.xlu0 %v1460, 64
    %v1564 = vpop.permute.xlu0 %1563
    %v1566 = vsel %vm354, %v1560, %v1564
    %v1568 = vsel %vm217, %v1566, 0
    %1570 = vmatprep.subr.mxu0 0.0
    %1571 = vmatpush1.msra.mxu0 %v436
    %1572 = vmatprep.subr.mxu0 0.0
    %1573 = vmatpush1.msra.mxu0 %v437
    %1574 = vmatprep.subr.mxu0 0.0
    %1575 = vmatpush1.msra.mxu0 %v438
    %1576 = vmatprep.subr.mxu0 0.0
    %1577 = vmatpush1.msra.mxu0 %v439
    %1578 = vmatprep.subr.mxu0 0.0
    %1579 = vmatpush1.msra.mxu0 %v440
    %1580 = vmatprep.subr.mxu0 0.0
    %1581 = vmatpush1.msra.mxu0 %v441
    %1582 = vmatprep.subr.mxu0 0.0
    %1583 = vmatpush1.msra.mxu0 %v442
    %1584 = vmatprep.subr.mxu0 0.0
    %1585 = vmatpush1.msra.mxu0 %v443
    %1586 = vmatprep.subr.mxu0 0.0
    %1587 = vmatpush1.msra.mxu0 0.0
    %1588 = vmatprep.subr.mxu0 0.0
    %1589 = vmatpush1.msra.mxu0 0.0
    %1590 = vmatprep.subr.mxu0 0.0
    %1591 = vmatpush1.msra.mxu0 0.0
    %1592 = vmatprep.subr.mxu0 0.0
    %1593 = vmatpush1.msra.mxu0 0.0
    %1594 = vmatprep.subr.mxu0 0.0
    %1595 = vmatpush1.msra.mxu0 0.0
    %1596 = vmatprep.subr.mxu0 0.0
    %1597 = vmatpush1.msra.mxu0 0.0
    %1598 = vmatprep.subr.mxu0 0.0
    %1599 = vmatpush1.msra.mxu0 0.0
    %1600 = vmatprep.subr.mxu0 0.0
    %1601 = vmatpush1.msra.mxu0 0.0
    %1602 = vmatprep.subr.mxu0 0.0
    %1603 = vmatpush1.msra.mxu0 0.0
    %1604 = vmatprep.subr.mxu0 0.0
    %1605 = vmatpush1.msra.mxu0 0.0
    %1606 = vmatprep.subr.mxu0 0.0
    %1607 = vmatpush1.msra.mxu0 0.0
    %1608 = vmatprep.subr.mxu0 0.0
    %1609 = vmatpush1.msra.mxu0 0.0
    %1610 = vmatprep.subr.mxu0 0.0
    %1611 = vmatpush1.msra.mxu0 0.0
    %1612 = vmatprep.subr.mxu0 0.0
    %1613 = vmatpush1.msra.mxu0 0.0
    %1614 = vmatprep.subr.mxu0 0.0
    %1615 = vmatpush1.msra.mxu0 0.0
    %1616 = vmatprep.subr.mxu0 0.0
    %1617 = vmatpush1.msra.mxu0 0.0
    %1618 = vmatprep.subr.mxu0 0.0
    %1619 = vmatpush1.msra.mxu0 0.0
    %1620 = vmatprep.subr.mxu0 0.0
    %1621 = vmatpush1.msra.mxu0 0.0
    %1622 = vmatprep.subr.mxu0 0.0
    %1623 = vmatpush1.msra.mxu0 0.0
    %1624 = vmatprep.subr.mxu0 0.0
    %1625 = vmatpush1.msra.mxu0 0.0
    %1626 = vmatprep.subr.mxu0 0.0
    %1627 = vmatpush1.msra.mxu0 0.0
    %1628 = vmatprep.subr.mxu0 0.0
    %1629 = vmatpush1.msra.mxu0 0.0
    %1630 = vmatprep.subr.mxu0 0.0
    %1631 = vmatpush1.msra.mxu0 0.0
    %1632 = vmatprep.subr.mxu0 0.0
    %1633 = vmatpush1.msra.mxu0 0.0
    %1634 = vmatprep.mubr.f32.mxu0 0.0
    %1635 = vmatmul.mubr.f32.gmra.mrb[0].mxu0 %v1568
    %v1636 = vpop.f32.mrb[0].mxu0
    %v1637 = vadd.f32 %v448, %v1636
    %v1638 = vpop.f32.mrb[0].mxu0
    %1639 = vdwg.mxu0
    %v1640 = vxor.u32 %v1637, 2147483648
    %v1641 = vmul.f32 %v1640, 1.442695
    %v1642 = vpow.pop %v1641
    %v1643 = vadd.f32 %v1642, 1.0
    %v1644 = vrcp.pop %v1643
    %v1645 = vmul.f32 1.0, %v1644
    %v1646 = vtanh.pop %v1637
    %v1647 = vmul.f32 %v1645, %v1454
    %1649 = vrot.lane.b32.xlu0 %v1646, 64
    %v1650 = vpop.permute.xlu0 %1649
    %v1652 = vmul.f32 %v1645, %v1650
    %1654 = vrot.lane.b32.xlu0 %v1652, 32
    %v1655 = vpop.permute.xlu0 %1654
    %v1657 = vadd.f32 %v1647, %v1655
    %v1658 = vtanh.pop %v1657
    %1660 = vrot.lane.b32.xlu0 %v1658, 64
    %v1661 = vpop.permute.xlu0 %1660
    %v1663 = vmul.f32 %v1645, %v1661
    %v1664 = vsel %vm354, %v1560, 0
    %1666 = vmatprep.subr.mxu0 0.0
    %1667 = vmatpush1.msra.mxu0 %v432
    %1668 = vmatprep.subr.mxu0 0.0
    %1669 = vmatpush1.msra.mxu0 %v433
    %1670 = vmatprep.subr.mxu0 0.0
    %1671 = vmatpush1.msra.mxu0 %v434
    %1672 = vmatprep.subr.mxu0 0.0
    %1673 = vmatpush1.msra.mxu0 %v435
    %1674 = vmatprep.subr.mxu0 0.0
    %1675 = vmatpush1.msra.mxu0 0.0
    %1676 = vmatprep.subr.mxu0 0.0
    %1677 = vmatpush1.msra.mxu0 0.0
    %1678 = vmatprep.subr.mxu0 0.0
    %1679 = vmatpush1.msra.mxu0 0.0
    %1680 = vmatprep.subr.mxu0 0.0
    %1681 = vmatpush1.msra.mxu0 0.0
    %1682 = vmatprep.subr.mxu0 0.0
    %1683 = vmatpush1.msra.mxu0 0.0
    %1684 = vmatprep.subr.mxu0 0.0
    %1685 = vmatpush1.msra.mxu0 0.0
    %1686 = vmatprep.subr.mxu0 0.0
    %1687 = vmatpush1.msra.mxu0 0.0
    %1688 = vmatprep.subr.mxu0 0.0
    %1689 = vmatpush1.msra.mxu0 0.0
    %1690 = vmatprep.subr.mxu0 0.0
    %1691 = vmatpush1.msra.mxu0 0.0
    %1692 = vmatprep.subr.mxu0 0.0
    %1693 = vmatpush1.msra.mxu0 0.0
    %1694 = vmatprep.subr.mxu0 0.0
    %1695 = vmatpush1.msra.mxu0 0.0
    %1696 = vmatprep.subr.mxu0 0.0
    %1697 = vmatpush1.msra.mxu0 0.0
    %1698 = vmatprep.subr.mxu0 0.0
    %1699 = vmatpush1.msra.mxu0 0.0
    %1700 = vmatprep.subr.mxu0 0.0
    %1701 = vmatpush1.msra.mxu0 0.0
    %1702 = vmatprep.subr.mxu0 0.0
    %1703 = vmatpush1.msra.mxu0 0.0
    %1704 = vmatprep.subr.mxu0 0.0
    %1705 = vmatpush1.msra.mxu0 0.0
    %1706 = vmatprep.subr.mxu0 0.0
    %1707 = vmatpush1.msra.mxu0 0.0
    %1708 = vmatprep.subr.mxu0 0.0
    %1709 = vmatpush1.msra.mxu0 0.0
    %1710 = vmatprep.subr.mxu0 0.0
    %1711 = vmatpush1.msra.mxu0 0.0
    %1712 = vmatprep.subr.mxu0 0.0
    %1713 = vmatpush1.msra.mxu0 0.0
    %1714 = vmatprep.subr.mxu0 0.0
    %1715 = vmatpush1.msra.mxu0 0.0
    %1716 = vmatprep.subr.mxu0 0.0
    %1717 = vmatpush1.msra.mxu0 0.0
    %1718 = vmatprep.subr.mxu0 0.0
    %1719 = vmatpush1.msra.mxu0 0.0
    %1720 = vmatprep.subr.mxu0 0.0
    %1721 = vmatpush1.msra.mxu0 0.0
    %1722 = vmatprep.subr.mxu0 0.0
    %1723 = vmatpush1.msra.mxu0 0.0
    %1724 = vmatprep.subr.mxu0 0.0
    %1725 = vmatpush1.msra.mxu0 0.0
    %1726 = vmatprep.subr.mxu0 0.0
    %1727 = vmatpush1.msra.mxu0 0.0
    %1728 = vmatprep.subr.mxu0 0.0
    %1729 = vmatpush1.msra.mxu0 0.0
    %1730 = vmatprep.mubr.f32.mxu0 0.0
    %1731 = vmatmul.mubr.f32.gmra.mrb[0].mxu0 %v1664
    %v1732 = vpop.f32.mrb[0].mxu0
    %v1733 = vadd.f32 0.0, %v1732
    %v1734 = vpop.f32.mrb[0].mxu0
    %1735 = vdwg.mxu0
    %v1736 = vadd.f32 %v426, %v1733
    %v1737 = vxor.u32 %v1736, 2147483648
    %v1738 = vmul.f32 %v1737, 1.442695
    %v1739 = vpow.pop %v1738
    %v1740 = vadd.f32 %v1739, 1.0
    %v1741 = vrcp.pop %v1740
    %v1742 = vmul.f32 1.0, %v1741
    %v1743 = vtanh.pop %v1736
    %v1744 = vmul.f32 %v1742, %v1551
    %1746 = vrot.lane.b32.xlu0 %v1743, 64
    %v1747 = vpop.permute.xlu0 %1746
    %v1749 = vmul.f32 %v1742, %v1747
    %1751 = vrot.lane.b32.xlu0 %v1749, 32
    %v1752 = vpop.permute.xlu0 %1751
    %v1754 = vadd.f32 %v1744, %v1752
    %v1755 = vtanh.pop %v1754
    %1757 = vrot.lane.b32.xlu0 %v1755, 64
    %v1758 = vpop.permute.xlu0 %1757
    %v1760 = vmul.f32 %v1742, %v1758
    %1762 = vrot.lane.b32.xlu0 %v1760, 32
    %v1763 = vpop.permute.xlu0 %1762
    %1766 = vrot.lane.b32.xlu0 %v1663, 64
    %v1767 = vpop.permute.xlu0 %1766
    %v1769 = vsel %vm354, %v1763, %v1767
    %v1771 = vsel %vm217, %v1769, 0
    %1773 = vmatprep.subr.mxu0 0.0
    %1774 = vmatpush1.msra.mxu0 %v436
    %1775 = vmatprep.subr.mxu0 0.0
    %1776 = vmatpush1.msra.mxu0 %v437
    %1777 = vmatprep.subr.mxu0 0.0
    %1778 = vmatpush1.msra.mxu0 %v438
    %1779 = vmatprep.subr.mxu0 0.0
    %1780 = vmatpush1.msra.mxu0 %v439
    %1781 = vmatprep.subr.mxu0 0.0
    %1782 = vmatpush1.msra.mxu0 %v440
    %1783 = vmatprep.subr.mxu0 0.0
    %1784 = vmatpush1.msra.mxu0 %v441
    %1785 = vmatprep.subr.mxu0 0.0
    %1786 = vmatpush1.msra.mxu0 %v442
    %1787 = vmatprep.subr.mxu0 0.0
    %1788 = vmatpush1.msra.mxu0 %v443
    %1789 = vmatprep.subr.mxu0 0.0
    %1790 = vmatpush1.msra.mxu0 0.0
    %1791 = vmatprep.subr.mxu0 0.0
    %1792 = vmatpush1.msra.mxu0 0.0
    %1793 = vmatprep.subr.mxu0 0.0
    %1794 = vmatpush1.msra.mxu0 0.0
    %1795 = vmatprep.subr.mxu0 0.0
    %1796 = vmatpush1.msra.mxu0 0.0
    %1797 = vmatprep.subr.mxu0 0.0
    %1798 = vmatpush1.msra.mxu0 0.0
    %1799 = vmatprep.subr.mxu0 0.0
    %1800 = vmatpush1.msra.mxu0 0.0
    %1801 = vmatprep.subr.mxu0 0.0
    %1802 = vmatpush1.msra.mxu0 0.0
    %1803 = vmatprep.subr.mxu0 0.0
    %1804 = vmatpush1.msra.mxu0 0.0
    %1805 = vmatprep.subr.mxu0 0.0
    %1806 = vmatpush1.msra.mxu0 0.0
    %1807 = vmatprep.subr.mxu0 0.0
    %1808 = vmatpush1.msra.mxu0 0.0
    %1809 = vmatprep.subr.mxu0 0.0
    %1810 = vmatpush1.msra.mxu0 0.0
    %1811 = vmatprep.subr.mxu0 0.0
    %1812 = vmatpush1.msra.mxu0 0.0
    %1813 = vmatprep.subr.mxu0 0.0
    %1814 = vmatpush1.msra.mxu0 0.0
    %1815 = vmatprep.subr.mxu0 0.0
    %1816 = vmatpush1.msra.mxu0 0.0
    %1817 = vmatprep.subr.mxu0 0.0
    %1818 = vmatpush1.msra.mxu0 0.0
    %1819 = vmatprep.subr.mxu0 0.0
    %1820 = vmatpush1.msra.mxu0 0.0
    %1821 = vmatprep.subr.mxu0 0.0
    %1822 = vmatpush1.msra.mxu0 0.0
    %1823 = vmatprep.subr.mxu0 0.0
    %1824 = vmatpush1.msra.mxu0 0.0
    %1825 = vmatprep.subr.mxu0 0.0
    %1826 = vmatpush1.msra.mxu0 0.0
    %1827 = vmatprep.subr.mxu0 0.0
    %1828 = vmatpush1.msra.mxu0 0.0
    %1829 = vmatprep.subr.mxu0 0.0
    %1830 = vmatpush1.msra.mxu0 0.0
    %1831 = vmatprep.subr.mxu0 0.0
    %1832 = vmatpush1.msra.mxu0 0.0
    %1833 = vmatprep.subr.mxu0 0.0
    %1834 = vmatpush1.msra.mxu0 0.0
    %1835 = vmatprep.subr.mxu0 0.0
    %1836 = vmatpush1.msra.mxu0 0.0
    %1837 = vmatprep.mubr.f32.mxu0 0.0
    %1838 = vmatmul.mubr.f32.gmra.mrb[0].mxu0 %v1771
    %v1839 = vpop.f32.mrb[0].mxu0
    %v1840 = vadd.f32 %v448, %v1839
    %v1841 = vpop.f32.mrb[0].mxu0
    %1842 = vdwg.mxu0
    %v1843 = vxor.u32 %v1840, 2147483648
    %v1844 = vmul.f32 %v1843, 1.442695
    %v1845 = vpow.pop %v1844
    %v1846 = vadd.f32 %v1845, 1.0
    %v1847 = vrcp.pop %v1846
    %v1848 = vmul.f32 1.0, %v1847
    %v1849 = vtanh.pop %v1840
    %v1850 = vmul.f32 %v1848, %v1657
    %1852 = vrot.lane.b32.xlu0 %v1849, 64
    %v1853 = vpop.permute.xlu0 %1852
    %v1855 = vmul.f32 %v1848, %v1853
    %1857 = vrot.lane.b32.xlu0 %v1855, 32
    %v1858 = vpop.permute.xlu0 %1857
    %v1860 = vadd.f32 %v1850, %v1858
    %v1861 = vtanh.pop %v1860
    %1863 = vrot.lane.b32.xlu0 %v1861, 64
    %v1864 = vpop.permute.xlu0 %1863
    %v1866 = vmul.f32 %v1848, %v1864
    %v1867 = vsel %vm354, %v1763, 0
    %1869 = vmatprep.subr.mxu0 0.0
    %1870 = vmatpush1.msra.mxu0 %v432
    %1871 = vmatprep.subr.mxu0 0.0
    %1872 = vmatpush1.msra.mxu0 %v433
    %1873 = vmatprep.subr.mxu0 0.0
    %1874 = vmatpush1.msra.mxu0 %v434
    %1875 = vmatprep.subr.mxu0 0.0
    %1876 = vmatpush1.msra.mxu0 %v435
    %1877 = vmatprep.subr.mxu0 0.0
    %1878 = vmatpush1.msra.mxu0 0.0
    %1879 = vmatprep.subr.mxu0 0.0
    %1880 = vmatpush1.msra.mxu0 0.0
    %1881 = vmatprep.subr.mxu0 0.0
    %1882 = vmatpush1.msra.mxu0 0.0
    %1883 = vmatprep.subr.mxu0 0.0
    %1884 = vmatpush1.msra.mxu0 0.0
    %1885 = vmatprep.subr.mxu0 0.0
    %1886 = vmatpush1.msra.mxu0 0.0
    %1887 = vmatprep.subr.mxu0 0.0
    %1888 = vmatpush1.msra.mxu0 0.0
    %1889 = vmatprep.subr.mxu0 0.0
    %1890 = vmatpush1.msra.mxu0 0.0
    %1891 = vmatprep.subr.mxu0 0.0
    %1892 = vmatpush1.msra.mxu0 0.0
    %1893 = vmatprep.subr.mxu0 0.0
    %1894 = vmatpush1.msra.mxu0 0.0
    %1895 = vmatprep.subr.mxu0 0.0
    %1896 = vmatpush1.msra.mxu0 0.0
    %1897 = vmatprep.subr.mxu0 0.0
    %1898 = vmatpush1.msra.mxu0 0.0
    %1899 = vmatprep.subr.mxu0 0.0
    %1900 = vmatpush1.msra.mxu0 0.0
    %1901 = vmatprep.subr.mxu0 0.0
    %1902 = vmatpush1.msra.mxu0 0.0
    %1903 = vmatprep.subr.mxu0 0.0
    %1904 = vmatpush1.msra.mxu0 0.0
    %1905 = vmatprep.subr.mxu0 0.0
    %1906 = vmatpush1.msra.mxu0 0.0
    %1907 = vmatprep.subr.mxu0 0.0
    %1908 = vmatpush1.msra.mxu0 0.0
    %1909 = vmatprep.subr.mxu0 0.0
    %1910 = vmatpush1.msra.mxu0 0.0
    %1911 = vmatprep.subr.mxu0 0.0
    %1912 = vmatpush1.msra.mxu0 0.0
    %1913 = vmatprep.subr.mxu0 0.0
    %1914 = vmatpush1.msra.mxu0 0.0
    %1915 = vmatprep.subr.mxu0 0.0
    %1916 = vmatpush1.msra.mxu0 0.0
    %1917 = vmatprep.subr.mxu0 0.0
    %1918 = vmatpush1.msra.mxu0 0.0
    %1919 = vmatprep.subr.mxu0 0.0
    %1920 = vmatpush1.msra.mxu0 0.0
    %1921 = vmatprep.subr.mxu0 0.0
    %1922 = vmatpush1.msra.mxu0 0.0
    %1923 = vmatprep.subr.mxu0 0.0
    %1924 = vmatpush1.msra.mxu0 0.0
    %1925 = vmatprep.subr.mxu0 0.0
    %1926 = vmatpush1.msra.mxu0 0.0
    %1927 = vmatprep.subr.mxu0 0.0
    %1928 = vmatpush1.msra.mxu0 0.0
    %1929 = vmatprep.subr.mxu0 0.0
    %1930 = vmatpush1.msra.mxu0 0.0
    %1931 = vmatprep.subr.mxu0 0.0
    %1932 = vmatpush1.msra.mxu0 0.0
    %1933 = vmatprep.mubr.f32.mxu0 0.0
    %1934 = vmatmul.mubr.f32.gmra.mrb[0].mxu0 %v1867
    %v1935 = vpop.f32.mrb[0].mxu0
    %v1936 = vadd.f32 0.0, %v1935
    %v1937 = vpop.f32.mrb[0].mxu0
    %1938 = vdwg.mxu0
    %v1939 = vadd.f32 %v429, %v1936
    %v1940 = vxor.u32 %v1939, 2147483648
    %v1941 = vmul.f32 %v1940, 1.442695
    %v1942 = vpow.pop %v1941
    %v1943 = vadd.f32 %v1942, 1.0
    %v1944 = vrcp.pop %v1943
    %v1945 = vmul.f32 1.0, %v1944
    %v1946 = vtanh.pop %v1939
    %v1947 = vmul.f32 %v1945, %v1754
    %1949 = vrot.lane.b32.xlu0 %v1946, 64
    %v1950 = vpop.permute.xlu0 %1949
    %v1952 = vmul.f32 %v1945, %v1950
    %1954 = vrot.lane.b32.xlu0 %v1952, 32
    %v1955 = vpop.permute.xlu0 %1954
    %v1957 = vadd.f32 %v1947, %v1955
    %v1958 = vtanh.pop %v1957
    %1960 = vrot.lane.b32.xlu0 %v1958, 64
    %v1961 = vpop.permute.xlu0 %1960
    %v1963 = vmul.f32 %v1945, %v1961
    %1965 = vrot.lane.b32.xlu0 %v1963, 32
    %v1966 = vpop.permute.xlu0 %1965
    %1969 = vrot.lane.b32.xlu0 %v1866, 64
    %v1970 = vpop.permute.xlu0 %1969
    %v1972 = vsel %vm354, %v1966, %v1970
    %v1974 = vsel %vm217, %v1972, 0
    %1976 = vmatprep.subr.mxu0 0.0
    %1977 = vmatpush1.msra.mxu0 %v436
    %1978 = vmatprep.subr.mxu0 0.0
    %1979 = vmatpush1.msra.mxu0 %v437
    %1980 = vmatprep.subr.mxu0 0.0
    %1981 = vmatpush1.msra.mxu0 %v438
    %1982 = vmatprep.subr.mxu0 0.0
    %1983 = vmatpush1.msra.mxu0 %v439
    %1984 = vmatprep.subr.mxu0 0.0
    %1985 = vmatpush1.msra.mxu0 %v440
    %1986 = vmatprep.subr.mxu0 0.0
    %1987 = vmatpush1.msra.mxu0 %v441
    %1988 = vmatprep.subr.mxu0 0.0
    %1989 = vmatpush1.msra.mxu0 %v442
    %1990 = vmatprep.subr.mxu0 0.0
    %1991 = vmatpush1.msra.mxu0 %v443
    %1992 = vmatprep.subr.mxu0 0.0
    %1993 = vmatpush1.msra.mxu0 0.0
    %1994 = vmatprep.subr.mxu0 0.0
    %1995 = vmatpush1.msra.mxu0 0.0
    %1996 = vmatprep.subr.mxu0 0.0
    %1997 = vmatpush1.msra.mxu0 0.0
    %1998 = vmatprep.subr.mxu0 0.0
    %1999 = vmatpush1.msra.mxu0 0.0
    %2000 = vmatprep.subr.mxu0 0.0
    %2001 = vmatpush1.msra.mxu0 0.0
    %2002 = vmatprep.subr.mxu0 0.0
    %2003 = vmatpush1.msra.mxu0 0.0
    %2004 = vmatprep.subr.mxu0 0.0
    %2005 = vmatpush1.msra.mxu0 0.0
    %2006 = vmatprep.subr.mxu0 0.0
    %2007 = vmatpush1.msra.mxu0 0.0
    %2008 = vmatprep.subr.mxu0 0.0
    %2009 = vmatpush1.msra.mxu0 0.0
    %2010 = vmatprep.subr.mxu0 0.0
    %2011 = vmatpush1.msra.mxu0 0.0
    %2012 = vmatprep.subr.mxu0 0.0
    %2013 = vmatpush1.msra.mxu0 0.0
    %2014 = vmatprep.subr.mxu0 0.0
    %2015 = vmatpush1.msra.mxu0 0.0
    %2016 = vmatprep.subr.mxu0 0.0
    %2017 = vmatpush1.msra.mxu0 0.0
    %2018 = vmatprep.subr.mxu0 0.0
    %2019 = vmatpush1.msra.mxu0 0.0
    %2020 = vmatprep.subr.mxu0 0.0
    %2021 = vmatpush1.msra.mxu0 0.0
    %2022 = vmatprep.subr.mxu0 0.0
    %2023 = vmatpush1.msra.mxu0 0.0
    %2024 = vmatprep.subr.mxu0 0.0
    %2025 = vmatpush1.msra.mxu0 0.0
    %2026 = vmatprep.subr.mxu0 0.0
    %2027 = vmatpush1.msra.mxu0 0.0
    %2028 = vmatprep.subr.mxu0 0.0
    %2029 = vmatpush1.msra.mxu0 0.0
    %2030 = vmatprep.subr.mxu0 0.0
    %2031 = vmatpush1.msra.mxu0 0.0
    %2032 = vmatprep.subr.mxu0 0.0
    %2033 = vmatpush1.msra.mxu0 0.0
    %2034 = vmatprep.subr.mxu0 0.0
    %2035 = vmatpush1.msra.mxu0 0.0
    %2036 = vmatprep.subr.mxu0 0.0
    %2037 = vmatpush1.msra.mxu0 0.0
    %2038 = vmatprep.subr.mxu0 0.0
    %2039 = vmatpush1.msra.mxu0 0.0
    %2040 = vmatprep.mubr.f32.mxu0 0.0
    %2041 = vmatmul.mubr.f32.gmra.mrb[0].mxu0 %v1974
    %v2042 = vpop.f32.mrb[0].mxu0
    %v2043 = vadd.f32 %v448, %v2042
    %v2044 = vpop.f32.mrb[0].mxu0
    %2045 = vdwg.mxu0
    %v2046 = vxor.u32 %v2043, 2147483648
    %v2047 = vmul.f32 %v2046, 1.442695
    %v2048 = vpow.pop %v2047
    %v2049 = vadd.f32 %v2048, 1.0
    %v2050 = vrcp.pop %v2049
    %v2051 = vmul.f32 1.0, %v2050
    %v2052 = vtanh.pop %v2043
    %v2053 = vmul.f32 %v2051, %v1860
    %2055 = vrot.lane.b32.xlu0 %v2052, 64
    %v2056 = vpop.permute.xlu0 %2055
    %v2058 = vmul.f32 %v2051, %v2056
    %2060 = vrot.lane.b32.xlu0 %v2058, 32
    %v2061 = vpop.permute.xlu0 %2060
    %v2063 = vadd.f32 %v2053, %v2061
    %v2064 = vtanh.pop %v2063
    %2066 = vrot.lane.b32.xlu0 %v2064, 64
    %v2067 = vpop.permute.xlu0 %2066
    %v2069 = vmul.f32 %v2051, %v2067
    %v2070 = vld [vmem:[%s1 + $0x48] sm:$0xf]
    %v2071 = vld [vmem:[%s1 + $0x4c] sm:$0xf]
    %v2072 = vld [vmem:[%s1 + $0x50] sm:$0xf]
    %v2073 = vld [vmem:[%s1 + $0x54] sm:$0xf]
    %v2074 = vpack.c.bf16 %v2069, %v2069
    %v2075 = vld [vmem:[%s3 + $0x6] sm:$0x1]
    %v2076 = vlaneseq
    %v2077 = vshrl.u32 %v2076, 7
    %v2078 = vsub.s32 0, %v2077
    %v2079 = vrot.slane %v2075, %v2078
    %2081 = vrot.lane.b32.xlu0 %v2074, 32
    %v2082 = vpop.permute.xlu0 %2081
    %v2087 = vunpack.c.l.b16 %v2070
    %v2088 = vunpack.c.l.b16 %v2071
    %v2089 = vunpack.c.l.b16 %v2072
    %v2090 = vunpack.c.l.b16 %v2073
    %v2091 = vpack.c.b16 %v2088, %v2087
    %v2092 = vpack.c.b16 %v2090, %v2089
    %v2096 = vsel %vm354, %v2082, 0
    %2098 = vmatprep.subr.bf16.mxu0 0
    %2099 = vmatpush1.bf16.msra.mxu0 %v2091
    %2100 = vmatprep.subr.bf16.mxu0 0
    %2101 = vmatpush1.bf16.msra.mxu0 %v2092
    %2102 = vmatprep.subr.bf16.mxu0 0
    %2103 = vmatpush1.bf16.msra.mxu0 0
    %2104 = vmatprep.subr.bf16.mxu0 0
    %2105 = vmatpush1.bf16.msra.mxu0 0
    %2106 = vmatprep.subr.bf16.mxu0 0
    %2107 = vmatpush1.bf16.msra.mxu0 0
    %2108 = vmatprep.subr.bf16.mxu0 0
    %2109 = vmatpush1.bf16.msra.mxu0 0
    %2110 = vmatprep.subr.bf16.mxu0 0
    %2111 = vmatpush1.bf16.msra.mxu0 0
    %2112 = vmatprep.subr.bf16.mxu0 0
    %2113 = vmatpush1.bf16.msra.mxu0 0
    %2114 = vmatprep.subr.bf16.mxu0 0
    %2115 = vmatpush1.bf16.msra.mxu0 0
    %2116 = vmatprep.subr.bf16.mxu0 0
    %2117 = vmatpush1.bf16.msra.mxu0 0
    %2118 = vmatprep.subr.bf16.mxu0 0
    %2119 = vmatpush1.bf16.msra.mxu0 0
    %2120 = vmatprep.subr.bf16.mxu0 0
    %2121 = vmatpush1.bf16.msra.mxu0 0
    %2122 = vmatprep.subr.bf16.mxu0 0
    %2123 = vmatpush1.bf16.msra.mxu0 0
    %2124 = vmatprep.subr.bf16.mxu0 0
    %2125 = vmatpush1.bf16.msra.mxu0 0
    %2126 = vmatprep.subr.bf16.mxu0 0
    %2127 = vmatpush1.bf16.msra.mxu0 0
    %2128 = vmatprep.subr.bf16.mxu0 0
    %2129 = vmatpush1.bf16.msra.mxu0 0
    %2130 = vmatprep.mubr.bf16.mxu0 0
    %2131 = vmatmul.mubr.bf16.gmra.mrb[0].mxu0 %v2096
    %v2132 = vpop.f32.mrb[0].mxu0
    %v2133 = vadd.f32 %v2079, %v2132
    %v2134 = vpop.f32.mrb[0].mxu0
    %v2135 = vpop.f32.mrb[0].mxu0
    %v2136 = vpop.f32.mrb[0].mxu0
    %2137 = vdwg.mxu0
    %v2138 = vmax.f32 %v2133, 0.0
    %v2139 = vld [vmem:[%s1 + $0x58] sm:$0xf]
    %v2140 = vld [vmem:[%s1 + $0x5c] sm:$0xf]
    %v2141 = vld [vmem:[%s1 + $0x60] sm:$0xf]
    %v2142 = vld [vmem:[%s1 + $0x64] sm:$0xf]
    %v2143 = vpack.c.bf16 %v2138, %v2138
    %v2144 = vld [vmem:[%s3 + $0x7] sm:$0x1]
    %v2145 = vlaneseq
    %v2146 = vshrl.u32 %v2145, 7
    %v2147 = vsub.s32 0, %v2146
    %v2148 = vrot.slane %v2144, %v2147
    %v2153 = vunpack.c.l.b16 %v2139
    %v2154 = vunpack.c.l.b16 %v2140
    %v2155 = vunpack.c.l.b16 %v2141
    %v2156 = vunpack.c.l.b16 %v2142
    %v2157 = vpack.c.b16 %v2154, %v2153
    %v2158 = vpack.c.b16 %v2156, %v2155
    %v2162 = vsel %vm354, %v2143, 0
    %2164 = vmatprep.subr.bf16.mxu0 0
    %2165 = vmatpush1.bf16.msra.mxu0 %v2157
    %2166 = vmatprep.subr.bf16.mxu0 0
    %2167 = vmatpush1.bf16.msra.mxu0 %v2158
    %2168 = vmatprep.subr.bf16.mxu0 0
    %2169 = vmatpush1.bf16.msra.mxu0 0
    %2170 = vmatprep.subr.bf16.mxu0 0
    %2171 = vmatpush1.bf16.msra.mxu0 0
    %2172 = vmatprep.subr.bf16.mxu0 0
    %2173 = vmatpush1.bf16.msra.mxu0 0
    %2174 = vmatprep.subr.bf16.mxu0 0
    %2175 = vmatpush1.bf16.msra.mxu0 0
    %2176 = vmatprep.subr.bf16.mxu0 0
    %2177 = vmatpush1.bf16.msra.mxu0 0
    %2178 = vmatprep.subr.bf16.mxu0 0
    %2179 = vmatpush1.bf16.msra.mxu0 0
    %2180 = vmatprep.subr.bf16.mxu0 0
    %2181 = vmatpush1.bf16.msra.mxu0 0
    %2182 = vmatprep.subr.bf16.mxu0 0
    %2183 = vmatpush1.bf16.msra.mxu0 0
    %2184 = vmatprep.subr.bf16.mxu0 0
    %2185 = vmatpush1.bf16.msra.mxu0 0
    %2186 = vmatprep.subr.bf16.mxu0 0
    %2187 = vmatpush1.bf16.msra.mxu0 0
    %2188 = vmatprep.subr.bf16.mxu0 0
    %2189 = vmatpush1.bf16.msra.mxu0 0
    %2190 = vmatprep.subr.bf16.mxu0 0
    %2191 = vmatpush1.bf16.msra.mxu0 0
    %2192 = vmatprep.subr.bf16.mxu0 0
    %2193 = vmatpush1.bf16.msra.mxu0 0
    %2194 = vmatprep.subr.bf16.mxu0 0
    %2195 = vmatpush1.bf16.msra.mxu0 0
    %2196 = vmatprep.mubr.bf16.mxu0 0
    %2197 = vmatmul.mubr.bf16.gmra.mrb[0].mxu0 %v2162
    %v2198 = vpop.f32.mrb[0].mxu0
    %v2199 = vadd.f32 %v2148, %v2198
    %v2200 = vpop.f32.mrb[0].mxu0
    %v2201 = vpop.f32.mrb[0].mxu0
    %v2202 = vpop.f32.mrb[0].mxu0
    %2203 = vdwg.mxu0
    %2204 = vst [vmem:[#allocation5] sm:$0xff] %v2199
    // Predicated region
    $region22: #{tpu_custom_call.1} parent=1 // pred_check
      _
    $region23: #{tpu_custom_call.1} parent=1 // pred_check_branch
      %2206 = sbr.rel (0) target = $region25
    $region24: #{tpu_custom_call.1} parent=1 // pred_region
      %s2208 = ssub.s32 128, 128
      %2209 = vsyncadd [#allocation4], %s2208
      %s2211 = sshll.u32 [#allocation5], 4
      %s2212 = int_to_ptr.vmem [resolvable:$true] %s2211
      %2214 = dma.vmem_to_hbm [thread:$0]  %s2212, 128, %s4, [#allocation4]
    $region25: #{tpu_custom_call.1} parent=1 // pred_fallthru
      _
    // Predicated region
    $region26: #{tpu_custom_call.1} parent=1 // pred_check
      _
    $region27: #{tpu_custom_call.1} parent=1 // pred_check_branch
      %2216 = sbr.rel (0) target = $region29
    $region28: #{tpu_custom_call.1} parent=1 // pred_region
      %2217 = dma.done [#allocation4], 128
    $region29: #{tpu_custom_call.1} parent=1 // pred_fallthru
      _
    %2218 = vsyncpa [#allocation3], 1
    %2219 = vsyncpa [#allocation4], 1

</llo_original>
